<compile_context>
chip_gen: v6e
topology: v6e:2x2x1
jax: 0.10.0
libtpu: 0.0.40
codegen_flags: <defaults>
</compile_context>

<pallas_src>
import functools

import jax
import jax.numpy as jnp
from jax.experimental import pallas as pl
from jax.experimental.pallas import tpu as pltpu


# sigmoid(z) = 0.5 * (1 + tanh(z/2)): fold the 0.5 pre-scale into the i/f/o columns.
_GATE_SCALE = (0.5, 0.5, 1.0, 0.5)   # (i, f, g[tanh], o)


# ---------------------------------------------------------------------------
# Weight packing: two independent LSTMs -> one gate-major slab
# ---------------------------------------------------------------------------
def _pack_w_pair(w_a, w_b, hout, *, shared_input):
    """Pack two independent LSTMs' weights into one gate-major slab.

    w_a, w_b: PyTorch-layout (4*hout, din) weights for AE 0 / AE 1.
    Columns: [i0 i1 | f0 f1 | g0 g1 | o0 o1], each block `hout` wide, sigmoid-gate
    columns pre-scaled by 0.5 (exact in fp).
    Rows: shared_input=True -> (din, 8*hout); else (2*din, 8*hout) block-diagonal.
    """
    din = w_a.shape[1]
    wts = (jnp.transpose(w_a).astype(jnp.float32),     # (din, 4*hout)
           jnp.transpose(w_b).astype(jnp.float32))
    rows = din if shared_input else 2 * din
    out = jnp.zeros((rows, 8 * hout), jnp.float32)
    for q in range(4):                                  # gate: i, f, g, o
        for a in range(2):                              # AE index
            blk = wts[a][:, q * hout:(q + 1) * hout] * _GATE_SCALE[q]
            col0 = q * 2 * hout + a * hout
            if shared_input:
                out = out.at[:, col0:col0 + hout].set(blk)
            else:
                out = out.at[a * din:(a + 1) * din, col0:col0 + hout].set(blk)
    return out


def _pack_b_pair(p_a, p_b, hout):
    """Pack (b_ih + b_hh) of two LSTMs into one gate-major (8*hout,) row."""
    out = jnp.zeros((8 * hout,), jnp.float32)
    for a, p in enumerate((p_a, p_b)):
        b = (p["b_ih"] + p["b_hh"]).astype(jnp.float32)
        for q in range(4):
            col0 = q * 2 * hout + a * hout
            out = out.at[col0:col0 + hout].set(b[q * hout:(q + 1) * hout] * _GATE_SCALE[q])
    return out


def pack_lstm_ae_pred_params(params):
    """Pack all weights of LSTM_AE_PRED into the two slabs the kernel consumes.

    Returns:
      w_rec    (2H+2D+Din+1, 8H+8D) bf16 : fused per-step matmul weight, rows are
               [h_e(2H) | h_d(2D) | x(Din) | 1], cols [encoder gates 8H | decoder gates 8D].
      w_ih_dec (2H, 8D)             bf16 : decoder input weights (block-diag per AE).
    Packing is done once, off the forward hot path.
    """
    rec, pred = params["reconstructor_ae"], params["prediction_ae"]
    H = rec["enc"]["w_hh"].shape[1]          # encoder hidden size
    D = rec["dec"]["w_hh"].shape[1]          # decoder hidden size (= input_size)
    Din = rec["enc"]["w_ih"].shape[1]        # input size
    GE, GD = 8 * H, 8 * D

    wih_e = _pack_w_pair(rec["enc"]["w_ih"], pred["enc"]["w_ih"], H, shared_input=True)    # (Din, GE)
    whh_e = _pack_w_pair(rec["enc"]["w_hh"], pred["enc"]["w_hh"], H, shared_input=False)   # (2H, GE)
    b_e = _pack_b_pair(rec["enc"], pred["enc"], H)                                         # (GE,)
    wih_d = _pack_w_pair(rec["dec"]["w_ih"], pred["dec"]["w_ih"], D, shared_input=False)   # (2H, GD)
    whh_d = _pack_w_pair(rec["dec"]["w_hh"], pred["dec"]["w_hh"], D, shared_input=False)   # (2D, GD)
    b_d = _pack_b_pair(rec["dec"], pred["dec"], D)                                         # (GD,)

    K = 2 * H + 2 * D + Din + 1
    w_rec = jnp.zeros((K, GE + GD), jnp.float32)
    w_rec = w_rec.at[0:2 * H, 0:GE].set(whh_e)                         # h_e -> encoder gates
    w_rec = w_rec.at[2 * H:2 * H + 2 * D, GE:].set(whh_d)              # h_d -> decoder gates
    w_rec = w_rec.at[2 * H + 2 * D:2 * H + 2 * D + Din, 0:GE].set(wih_e)  # x  -> encoder gates
    w_rec = w_rec.at[K - 1, 0:GE].set(b_e)                             # ones lane -> encoder bias
    w_rec = w_rec.at[K - 1, GE:].set(b_d)                              # ones lane -> decoder bias

    return {
        "w_rec": w_rec.astype(jnp.bfloat16),       # bf16 MXU operands, f32 accumulation
        "w_ih_dec": wih_d.astype(jnp.bfloat16),
    }


# ---------------------------------------------------------------------------
# Fused kernel: both AEs, encoder + decoder, all time steps, one invocation
# ---------------------------------------------------------------------------
def _fused_lstm_ae_pred_kernel(x_ref, w_rec_ref, w_ihd_ref, out_rec_ref, out_pred_ref,
                               *, hidden, dout, din, batch, steps):
    """Grid-less fused forward of LSTM_AE_PRED.

    x_ref       : (B, T*Din) f32   raw input, time-major along lanes
    w_rec_ref   : (2H+2D+Din+1, 8H+8D) bf16   fused recurrent/input/bias weight
    w_ihd_ref   : (2H, 8D) bf16    packed decoder input weights
    out_rec_ref : (B, T*D) f32     reconstructor_ae decoder hiddens (lane t*D..)
    out_pred_ref: (B, T*D) f32     prediction_ae decoder hiddens
    """
    f32, bf16 = jnp.float32, jnp.bfloat16
    GE, GD = 8 * hidden, 8 * dout
    he_w, hd_w = 2 * hidden, 2 * dout

    # Weights stay resident for the whole (unrolled) recurrence.
    w_rec = w_rec_ref[...]
    w_ihd = w_ihd_ref[...]

    # Zero initial states (PyTorch default); carries live in vregs, no scratch.
    h_e = jnp.zeros((batch, he_w), f32)
    c_e = jnp.zeros((batch, he_w), f32)
    h_d = jnp.zeros((batch, hd_w), f32)
    c_d = jnp.zeros((batch, hd_w), f32)
    one = jnp.ones((batch, 1), f32)          # hoisted constant-1 lane (bias row of w_rec)

    def cell(pre, c_prev, w):
        # pre: (B, 8w) gate pre-activations, gate-major [i|f|g|o] blocks of width 2w,
        # sigmoid columns pre-scaled by 0.5 so sigmoid(z) = 0.5*tanh(pre) + 0.5.
        t_all = jnp.tanh(pre)                # one EUP stream for all gates of both AEs
        s_all = 0.5 * t_all + 0.5            # sigmoid slab computed once (full-vreg VPU op)
        i_g = s_all[:, 0 * 2 * w:1 * 2 * w]
        f_g = s_all[:, 1 * 2 * w:2 * 2 * w]
        g_g = t_all[:, 2 * 2 * w:3 * 2 * w]
        o_g = s_all[:, 3 * 2 * w:4 * 2 * w]
        c_new = f_g * c_prev + i_g * g_g
        h_new = o_g * jnp.tanh(c_new)
        return h_new, c_new

    hs_rec, hs_pred = [], []

    # Full static unroll (T is small). For long sequences switch to
    # lax.fori_loop(..., unroll=8) with pl.ds-indexed x_ref / out_ref instead.
    for t in range(steps):
        x_t = x_ref[:, t * din:(t + 1) * din]                     # (B, Din), static slice
        # One fused MXU matmul: encoder gates (+ input proj + enc bias) AND the
        # h_d @ W_hh_dec + dec bias partial, for BOTH AEs.
        lhs = jnp.concatenate([h_e, h_d, x_t, one], axis=-1).astype(bf16)   # (B, 2H+2D+Din+1)
        fused = jnp.dot(lhs, w_rec, preferred_element_type=f32)             # (B, GE+GD)

        h_e, c_e = cell(fused[:, :GE], c_e, hidden)

        # Decoder fed directly from this step's encoder hidden (stays in vregs).
        pre_d = (jnp.dot(h_e.astype(bf16), w_ihd, preferred_element_type=f32)
                 + fused[:, GE:GE + GD])
        h_d, c_d = cell(pre_d, c_d, dout)

        hs_rec.append(h_d[:, 0:dout])            # AE0 = reconstructor
        hs_pred.append(h_d[:, dout:2 * dout])    # AE1 = prediction

    # Single lane-dense store per output (no per-step masked stores).
    out_rec_ref[...] = jnp.concatenate(hs_rec, axis=-1).astype(out_rec_ref.dtype)
    out_pred_ref[...] = jnp.concatenate(hs_pred, axis=-1).astype(out_pred_ref.dtype)


# ---------------------------------------------------------------------------
# Wrapper: launch the single fused kernel
# ---------------------------------------------------------------------------
def lstm_ae_pred_forward(x, packed):
    """LSTM_AE_PRED.forward: returns (dec, prediction), each (B, T, input_size)."""
    B, T, Din = x.shape
    w_rec, w_ihd = packed["w_rec"], packed["w_ih_dec"]
    H = w_ihd.shape[0] // 2          # encoder hidden size
    D = w_ihd.shape[1] // 8          # decoder hidden size (= input_size)

    x2d = x.reshape(B, T * Din).astype(jnp.float32)   # contiguous reshape, no transpose

    kernel = functools.partial(
        _fused_lstm_ae_pred_kernel, hidden=H, dout=D, din=Din, batch=B, steps=T)

    vmem = pl.BlockSpec(memory_space=pltpu.MemorySpace.VMEM)
    out_rec, out_pred = pl.pallas_call(
        kernel,
        out_shape=(jax.ShapeDtypeStruct((B, T * D), jnp.float32),
                   jax.ShapeDtypeStruct((B, T * D), jnp.float32)),
        in_specs=[vmem, vmem, vmem],
        out_specs=(vmem, vmem),
    )(x2d, w_rec, w_ihd)

    dec = out_rec.reshape(B, T, D)          # reconstructor_ae output
    prediction = out_pred.reshape(B, T, D)  # prediction_ae output
    return dec, prediction


# ---------------------------------------------------------------------------
# Parameter init (PyTorch nn.LSTM default: U(-1/sqrt(H), 1/sqrt(H)))
# ---------------------------------------------------------------------------
def init_lstm_params(key, input_size, hidden_size):
    k = 1.0 / jnp.sqrt(jnp.float32(hidden_size))
    k_wih, k_whh, k_bih, k_bhh = jax.random.split(key, 4)
    return {
        "w_ih": jax.random.uniform(k_wih, (4 * hidden_size, input_size), jnp.float32, -k, k),
        "w_hh": jax.random.uniform(k_whh, (4 * hidden_size, hidden_size), jnp.float32, -k, k),
        "b_ih": jax.random.uniform(k_bih, (4 * hidden_size,), jnp.float32, -k, k),
        "b_hh": jax.random.uniform(k_bhh, (4 * hidden_size,), jnp.float32, -k, k),
    }


def init_lstm_ae_params(key, input_size, hidden_size):
    k_enc, k_dec = jax.random.split(key, 2)
    return {
        "enc": init_lstm_params(k_enc, input_size, hidden_size),   # input  -> hidden
        "dec": init_lstm_params(k_dec, hidden_size, input_size),   # hidden -> input
    }


def init_lstm_ae_pred_params(key, input_size=1, hidden_size=16):
    k_rec, k_pred = jax.random.split(key, 2)
    return {
        "reconstructor_ae": init_lstm_ae_params(k_rec, input_size, hidden_size),
        "prediction_ae": init_lstm_ae_params(k_pred, input_size, hidden_size),
    }


# ---------------------------------------------------------------------------
# Plain-JAX reference (PyTorch semantics, f32 HIGHEST precision) for self-check
# ---------------------------------------------------------------------------
def _lstm_ref(x, p):
    B, _, _ = x.shape
    H = p["w_hh"].shape[1]
    wih_t = jnp.transpose(p["w_ih"]).astype(jnp.float32)
    whh_t = jnp.transpose(p["w_hh"]).astype(jnp.float32)
    b = (p["b_ih"] + p["b_hh"]).astype(jnp.float32)[None, :]
    hi = jax.lax.Precision.HIGHEST

    def step(carry, x_t):
        h, c = carry
        z = jnp.dot(x_t, wih_t, precision=hi) + jnp.dot(h, whh_t, precision=hi) + b
        i = jax.nn.sigmoid(z[:, 0:H])
        f = jax.nn.sigmoid(z[:, H:2 * H])
        g = jnp.tanh(z[:, 2 * H:3 * H])
        o = jax.nn.sigmoid(z[:, 3 * H:4 * H])
        c = f * c + i * g
        h = o * jnp.tanh(c)
        return (h, c), h

    x_tm = jnp.transpose(x, (1, 0, 2)).astype(jnp.float32)
    init = (jnp.zeros((B, H), jnp.float32), jnp.zeros((B, H), jnp.float32))
    _, hs = jax.lax.scan(step, init, x_tm)
    return jnp.transpose(hs, (1, 0, 2))


def _lstm_ae_pred_reference(x, params):
    def ae(p):
        return _lstm_ref(_lstm_ref(x, p["enc"]), p["dec"])
    return ae(params["reconstructor_ae"]), ae(params["prediction_ae"])


if __name__ == "__main__":
    INPUT_SIZE = 1
    HIDDEN_SIZE = 16
    B, T = 2, 8

    key = jax.random.PRNGKey(0)
    k_x, k_params = jax.random.split(key, 2)

    # x matches the PyTorch batch_first convention: (batch, seq, input_size)
    x = jax.random.normal(k_x, (B, T, INPUT_SIZE), dtype=jnp.float32)
    params = init_lstm_ae_pred_params(k_params, INPUT_SIZE, HIDDEN_SIZE)

    packed = pack_lstm_ae_pred_params(params)   # one-time weight packing
    fwd = jax.jit(lstm_ae_pred_forward)
    dec, prediction = fwd(x, packed)
    jax.block_until_ready((dec, prediction))

    assert dec.shape == (B, T, INPUT_SIZE)
    assert prediction.shape == (B, T, INPUT_SIZE)

    # Numerical self-check vs the plain-JAX PyTorch-semantics f32 reference.
    # Kernel uses bf16 MXU operands (per perf review) with f32 accumulation/cell math,
    # so the tolerance is relaxed from 5e-3 to 2e-2.
    dec_ref, pred_ref = _lstm_ae_pred_reference(x, params)
    assert jnp.max(jnp.abs(dec - dec_ref)) < 2e-2, "reconstructor mismatch vs reference"
    assert jnp.max(jnp.abs(prediction - pred_ref)) < 2e-2, "prediction mismatch vs reference"

    print("KERNEL_OK")
</pallas_src>

<mosaic_0001>
module attributes {stable_mosaic.version = 11 : i64} {
  func.func @_fused_lstm_ae_pred_kernel(%arg0: memref<2x8xf32, #tpu.memory_space<vmem>>, %arg1: memref<36x136xbf16, #tpu.memory_space<vmem>>, %arg2: memref<32x8xbf16, #tpu.memory_space<vmem>>, %arg3: memref<2x8xf32, #tpu.memory_space<vmem>>, %arg4: memref<2x8xf32, #tpu.memory_space<vmem>>) attributes {dimension_semantics = [], scalar_prefetch = 0 : i64, scratch_operands = 0 : i64, tpu.core_type = #tpu.core_type<tc>} {
    %c0 = arith.constant 0 : index
    %c0_0 = arith.constant 0 : index
    %0 = vector.load %arg1[%c0, %c0_0] : memref<36x136xbf16, #tpu.memory_space<vmem>>, vector<36x136xbf16>
    %c0_1 = arith.constant 0 : index
    %c0_2 = arith.constant 0 : index
    %1 = vector.load %arg2[%c0_1, %c0_2] : memref<32x8xbf16, #tpu.memory_space<vmem>>, vector<32x8xbf16>
    %cst = arith.constant 0.000000e+00 : f32
    %2 = vector.broadcast %cst : f32 to vector<2x32xf32>
    %cst_3 = arith.constant 0.000000e+00 : f32
    %3 = vector.broadcast %cst_3 : f32 to vector<2x32xf32>
    %cst_4 = arith.constant 0.000000e+00 : f32
    %4 = vector.broadcast %cst_4 : f32 to vector<2x2xf32>
    %cst_5 = arith.constant 0.000000e+00 : f32
    %5 = vector.broadcast %cst_5 : f32 to vector<2x2xf32>
    %cst_6 = arith.constant 1.000000e+00 : f32
    %6 = vector.broadcast %cst_6 : f32 to vector<2x1xf32>
    %c0_7 = arith.constant 0 : index
    %c0_8 = arith.constant 0 : index
    %7 = vector.load %arg0[%c0_7, %c0_8] : memref<2x8xf32, #tpu.memory_space<vmem>>, vector<2x1xf32>
    %8 = tpu.concatenate %2, %4, %7, %6 in 1 : vector<2x32xf32>, vector<2x2xf32>, vector<2x1xf32>, vector<2x1xf32> -> vector<2x36xf32>
    %9 = arith.truncf %8 : vector<2x36xf32> to vector<2x36xbf16>
    %cst_9 = arith.constant dense<0.000000e+00> : vector<2x136xf32>
    %10 = tpu.matmul %9, %0, %cst_9 {dimension_numbers = #tpu.dot_dimension_numbers<[1], [0], [0], [1], [0, 0, 1, 1], [], []>} : vector<2x36xbf16>, vector<36x136xbf16>, vector<2x136xf32> -> vector<2x136xf32>
    %11 = vector.extract_strided_slice %10 {offsets = [0, 0], sizes = [2, 128], strides = [1, 1]} : vector<2x136xf32> to vector<2x128xf32>
    %12 = math.tanh %11 : vector<2x128xf32>
    %cst_10 = arith.constant 5.000000e-01 : f32
    %13 = vector.broadcast %cst_10 : f32 to vector<2x128xf32>
    %14 = arith.mulf %13, %12 : vector<2x128xf32>
    %cst_11 = arith.constant 5.000000e-01 : f32
    %15 = vector.broadcast %cst_11 : f32 to vector<2x128xf32>
    %16 = arith.addf %14, %15 : vector<2x128xf32>
    %17 = vector.extract_strided_slice %16 {offsets = [0, 0], sizes = [2, 32], strides = [1, 1]} : vector<2x128xf32> to vector<2x32xf32>
    %18 = vector.extract_strided_slice %16 {offsets = [0, 32], sizes = [2, 32], strides = [1, 1]} : vector<2x128xf32> to vector<2x32xf32>
    %19 = vector.extract_strided_slice %12 {offsets = [0, 64], sizes = [2, 32], strides = [1, 1]} : vector<2x128xf32> to vector<2x32xf32>
    %20 = vector.extract_strided_slice %16 {offsets = [0, 96], sizes = [2, 32], strides = [1, 1]} : vector<2x128xf32> to vector<2x32xf32>
    %21 = arith.mulf %18, %3 : vector<2x32xf32>
    %22 = arith.mulf %17, %19 : vector<2x32xf32>
    %23 = arith.addf %21, %22 : vector<2x32xf32>
    %24 = math.tanh %23 : vector<2x32xf32>
    %25 = arith.mulf %20, %24 : vector<2x32xf32>
    %26 = arith.truncf %25 : vector<2x32xf32> to vector<2x32xbf16>
    %cst_12 = arith.constant dense<0.000000e+00> : vector<2x8xf32>
    %27 = tpu.matmul %26, %1, %cst_12 {dimension_numbers = #tpu.dot_dimension_numbers<[1], [0], [0], [1], [0, 0, 1, 1], [], []>} : vector<2x32xbf16>, vector<32x8xbf16>, vector<2x8xf32> -> vector<2x8xf32>
    %28 = vector.extract_strided_slice %10 {offsets = [0, 128], sizes = [2, 8], strides = [1, 1]} : vector<2x136xf32> to vector<2x8xf32>
    %29 = arith.addf %27, %28 : vector<2x8xf32>
    %30 = math.tanh %29 : vector<2x8xf32>
    %cst_13 = arith.constant 5.000000e-01 : f32
    %31 = vector.broadcast %cst_13 : f32 to vector<2x8xf32>
    %32 = arith.mulf %31, %30 : vector<2x8xf32>
    %cst_14 = arith.constant 5.000000e-01 : f32
    %33 = vector.broadcast %cst_14 : f32 to vector<2x8xf32>
    %34 = arith.addf %32, %33 : vector<2x8xf32>
    %35 = vector.extract_strided_slice %34 {offsets = [0, 0], sizes = [2, 2], strides = [1, 1]} : vector<2x8xf32> to vector<2x2xf32>
    %36 = vector.extract_strided_slice %34 {offsets = [0, 2], sizes = [2, 2], strides = [1, 1]} : vector<2x8xf32> to vector<2x2xf32>
    %37 = vector.extract_strided_slice %30 {offsets = [0, 4], sizes = [2, 2], strides = [1, 1]} : vector<2x8xf32> to vector<2x2xf32>
    %38 = vector.extract_strided_slice %34 {offsets = [0, 6], sizes = [2, 2], strides = [1, 1]} : vector<2x8xf32> to vector<2x2xf32>
    %39 = arith.mulf %36, %5 : vector<2x2xf32>
    %40 = arith.mulf %35, %37 : vector<2x2xf32>
    %41 = arith.addf %39, %40 : vector<2x2xf32>
    %42 = math.tanh %41 : vector<2x2xf32>
    %43 = arith.mulf %38, %42 : vector<2x2xf32>
    %44 = vector.extract_strided_slice %43 {offsets = [0, 0], sizes = [2, 1], strides = [1, 1]} : vector<2x2xf32> to vector<2x1xf32>
    %45 = vector.extract_strided_slice %43 {offsets = [0, 1], sizes = [2, 1], strides = [1, 1]} : vector<2x2xf32> to vector<2x1xf32>
    %c0_15 = arith.constant 0 : index
    %c1 = arith.constant 1 : index
    %46 = vector.load %arg0[%c0_15, %c1] : memref<2x8xf32, #tpu.memory_space<vmem>>, vector<2x1xf32>
    %47 = tpu.concatenate %25, %43, %46, %6 in 1 : vector<2x32xf32>, vector<2x2xf32>, vector<2x1xf32>, vector<2x1xf32> -> vector<2x36xf32>
    %48 = arith.truncf %47 : vector<2x36xf32> to vector<2x36xbf16>
    %cst_16 = arith.constant dense<0.000000e+00> : vector<2x136xf32>
    %49 = tpu.matmul %48, %0, %cst_16 {dimension_numbers = #tpu.dot_dimension_numbers<[1], [0], [0], [1], [0, 0, 1, 1], [], []>} : vector<2x36xbf16>, vector<36x136xbf16>, vector<2x136xf32> -> vector<2x136xf32>
    %50 = vector.extract_strided_slice %49 {offsets = [0, 0], sizes = [2, 128], strides = [1, 1]} : vector<2x136xf32> to vector<2x128xf32>
    %51 = math.tanh %50 : vector<2x128xf32>
    %cst_17 = arith.constant 5.000000e-01 : f32
    %52 = vector.broadcast %cst_17 : f32 to vector<2x128xf32>
    %53 = arith.mulf %52, %51 : vector<2x128xf32>
    %cst_18 = arith.constant 5.000000e-01 : f32
    %54 = vector.broadcast %cst_18 : f32 to vector<2x128xf32>
    %55 = arith.addf %53, %54 : vector<2x128xf32>
    %56 = vector.extract_strided_slice %55 {offsets = [0, 0], sizes = [2, 32], strides = [1, 1]} : vector<2x128xf32> to vector<2x32xf32>
    %57 = vector.extract_strided_slice %55 {offsets = [0, 32], sizes = [2, 32], strides = [1, 1]} : vector<2x128xf32> to vector<2x32xf32>
    %58 = vector.extract_strided_slice %51 {offsets = [0, 64], sizes = [2, 32], strides = [1, 1]} : vector<2x128xf32> to vector<2x32xf32>
    %59 = vector.extract_strided_slice %55 {offsets = [0, 96], sizes = [2, 32], strides = [1, 1]} : vector<2x128xf32> to vector<2x32xf32>
    %60 = arith.mulf %57, %23 : vector<2x32xf32>
    %61 = arith.mulf %56, %58 : vector<2x32xf32>
    %62 = arith.addf %60, %61 : vector<2x32xf32>
    %63 = math.tanh %62 : vector<2x32xf32>
    %64 = arith.mulf %59, %63 : vector<2x32xf32>
    %65 = arith.truncf %64 : vector<2x32xf32> to vector<2x32xbf16>
    %cst_19 = arith.constant dense<0.000000e+00> : vector<2x8xf32>
    %66 = tpu.matmul %65, %1, %cst_19 {dimension_numbers = #tpu.dot_dimension_numbers<[1], [0], [0], [1], [0, 0, 1, 1], [], []>} : vector<2x32xbf16>, vector<32x8xbf16>, vector<2x8xf32> -> vector<2x8xf32>
    %67 = vector.extract_strided_slice %49 {offsets = [0, 128], sizes = [2, 8], strides = [1, 1]} : vector<2x136xf32> to vector<2x8xf32>
    %68 = arith.addf %66, %67 : vector<2x8xf32>
    %69 = math.tanh %68 : vector<2x8xf32>
    %cst_20 = arith.constant 5.000000e-01 : f32
    %70 = vector.broadcast %cst_20 : f32 to vector<2x8xf32>
    %71 = arith.mulf %70, %69 : vector<2x8xf32>
    %cst_21 = arith.constant 5.000000e-01 : f32
    %72 = vector.broadcast %cst_21 : f32 to vector<2x8xf32>
    %73 = arith.addf %71, %72 : vector<2x8xf32>
    %74 = vector.extract_strided_slice %73 {offsets = [0, 0], sizes = [2, 2], strides = [1, 1]} : vector<2x8xf32> to vector<2x2xf32>
    %75 = vector.extract_strided_slice %73 {offsets = [0, 2], sizes = [2, 2], strides = [1, 1]} : vector<2x8xf32> to vector<2x2xf32>
    %76 = vector.extract_strided_slice %69 {offsets = [0, 4], sizes = [2, 2], strides = [1, 1]} : vector<2x8xf32> to vector<2x2xf32>
    %77 = vector.extract_strided_slice %73 {offsets = [0, 6], sizes = [2, 2], strides = [1, 1]} : vector<2x8xf32> to vector<2x2xf32>
    %78 = arith.mulf %75, %41 : vector<2x2xf32>
    %79 = arith.mulf %74, %76 : vector<2x2xf32>
    %80 = arith.addf %78, %79 : vector<2x2xf32>
    %81 = math.tanh %80 : vector<2x2xf32>
    %82 = arith.mulf %77, %81 : vector<2x2xf32>
    %83 = vector.extract_strided_slice %82 {offsets = [0, 0], sizes = [2, 1], strides = [1, 1]} : vector<2x2xf32> to vector<2x1xf32>
    %84 = vector.extract_strided_slice %82 {offsets = [0, 1], sizes = [2, 1], strides = [1, 1]} : vector<2x2xf32> to vector<2x1xf32>
    %c0_22 = arith.constant 0 : index
    %c2 = arith.constant 2 : index
    %85 = vector.load %arg0[%c0_22, %c2] : memref<2x8xf32, #tpu.memory_space<vmem>>, vector<2x1xf32>
    %86 = tpu.concatenate %64, %82, %85, %6 in 1 : vector<2x32xf32>, vector<2x2xf32>, vector<2x1xf32>, vector<2x1xf32> -> vector<2x36xf32>
    %87 = arith.truncf %86 : vector<2x36xf32> to vector<2x36xbf16>
    %cst_23 = arith.constant dense<0.000000e+00> : vector<2x136xf32>
    %88 = tpu.matmul %87, %0, %cst_23 {dimension_numbers = #tpu.dot_dimension_numbers<[1], [0], [0], [1], [0, 0, 1, 1], [], []>} : vector<2x36xbf16>, vector<36x136xbf16>, vector<2x136xf32> -> vector<2x136xf32>
    %89 = vector.extract_strided_slice %88 {offsets = [0, 0], sizes = [2, 128], strides = [1, 1]} : vector<2x136xf32> to vector<2x128xf32>
    %90 = math.tanh %89 : vector<2x128xf32>
    %cst_24 = arith.constant 5.000000e-01 : f32
    %91 = vector.broadcast %cst_24 : f32 to vector<2x128xf32>
    %92 = arith.mulf %91, %90 : vector<2x128xf32>
    %cst_25 = arith.constant 5.000000e-01 : f32
    %93 = vector.broadcast %cst_25 : f32 to vector<2x128xf32>
    %94 = arith.addf %92, %93 : vector<2x128xf32>
    %95 = vector.extract_strided_slice %94 {offsets = [0, 0], sizes = [2, 32], strides = [1, 1]} : vector<2x128xf32> to vector<2x32xf32>
    %96 = vector.extract_strided_slice %94 {offsets = [0, 32], sizes = [2, 32], strides = [1, 1]} : vector<2x128xf32> to vector<2x32xf32>
    %97 = vector.extract_strided_slice %90 {offsets = [0, 64], sizes = [2, 32], strides = [1, 1]} : vector<2x128xf32> to vector<2x32xf32>
    %98 = vector.extract_strided_slice %94 {offsets = [0, 96], sizes = [2, 32], strides = [1, 1]} : vector<2x128xf32> to vector<2x32xf32>
    %99 = arith.mulf %96, %62 : vector<2x32xf32>
    %100 = arith.mulf %95, %97 : vector<2x32xf32>
    %101 = arith.addf %99, %100 : vector<2x32xf32>
    %102 = math.tanh %101 : vector<2x32xf32>
    %103 = arith.mulf %98, %102 : vector<2x32xf32>
    %104 = arith.truncf %103 : vector<2x32xf32> to vector<2x32xbf16>
    %cst_26 = arith.constant dense<0.000000e+00> : vector<2x8xf32>
    %105 = tpu.matmul %104, %1, %cst_26 {dimension_numbers = #tpu.dot_dimension_numbers<[1], [0], [0], [1], [0, 0, 1, 1], [], []>} : vector<2x32xbf16>, vector<32x8xbf16>, vector<2x8xf32> -> vector<2x8xf32>
    %106 = vector.extract_strided_slice %88 {offsets = [0, 128], sizes = [2, 8], strides = [1, 1]} : vector<2x136xf32> to vector<2x8xf32>
    %107 = arith.addf %105, %106 : vector<2x8xf32>
    %108 = math.tanh %107 : vector<2x8xf32>
    %cst_27 = arith.constant 5.000000e-01 : f32
    %109 = vector.broadcast %cst_27 : f32 to vector<2x8xf32>
    %110 = arith.mulf %109, %108 : vector<2x8xf32>
    %cst_28 = arith.constant 5.000000e-01 : f32
    %111 = vector.broadcast %cst_28 : f32 to vector<2x8xf32>
    %112 = arith.addf %110, %111 : vector<2x8xf32>
    %113 = vector.extract_strided_slice %112 {offsets = [0, 0], sizes = [2, 2], strides = [1, 1]} : vector<2x8xf32> to vector<2x2xf32>
    %114 = vector.extract_strided_slice %112 {offsets = [0, 2], sizes = [2, 2], strides = [1, 1]} : vector<2x8xf32> to vector<2x2xf32>
    %115 = vector.extract_strided_slice %108 {offsets = [0, 4], sizes = [2, 2], strides = [1, 1]} : vector<2x8xf32> to vector<2x2xf32>
    %116 = vector.extract_strided_slice %112 {offsets = [0, 6], sizes = [2, 2], strides = [1, 1]} : vector<2x8xf32> to vector<2x2xf32>
    %117 = arith.mulf %114, %80 : vector<2x2xf32>
    %118 = arith.mulf %113, %115 : vector<2x2xf32>
    %119 = arith.addf %117, %118 : vector<2x2xf32>
    %120 = math.tanh %119 : vector<2x2xf32>
    %121 = arith.mulf %116, %120 : vector<2x2xf32>
    %122 = vector.extract_strided_slice %121 {offsets = [0, 0], sizes = [2, 1], strides = [1, 1]} : vector<2x2xf32> to vector<2x1xf32>
    %123 = vector.extract_strided_slice %121 {offsets = [0, 1], sizes = [2, 1], strides = [1, 1]} : vector<2x2xf32> to vector<2x1xf32>
    %c0_29 = arith.constant 0 : index
    %c3 = arith.constant 3 : index
    %124 = vector.load %arg0[%c0_29, %c3] : memref<2x8xf32, #tpu.memory_space<vmem>>, vector<2x1xf32>
    %125 = tpu.concatenate %103, %121, %124, %6 in 1 : vector<2x32xf32>, vector<2x2xf32>, vector<2x1xf32>, vector<2x1xf32> -> vector<2x36xf32>
    %126 = arith.truncf %125 : vector<2x36xf32> to vector<2x36xbf16>
    %cst_30 = arith.constant dense<0.000000e+00> : vector<2x136xf32>
    %127 = tpu.matmul %126, %0, %cst_30 {dimension_numbers = #tpu.dot_dimension_numbers<[1], [0], [0], [1], [0, 0, 1, 1], [], []>} : vector<2x36xbf16>, vector<36x136xbf16>, vector<2x136xf32> -> vector<2x136xf32>
    %128 = vector.extract_strided_slice %127 {offsets = [0, 0], sizes = [2, 128], strides = [1, 1]} : vector<2x136xf32> to vector<2x128xf32>
    %129 = math.tanh %128 : vector<2x128xf32>
    %cst_31 = arith.constant 5.000000e-01 : f32
    %130 = vector.broadcast %cst_31 : f32 to vector<2x128xf32>
    %131 = arith.mulf %130, %129 : vector<2x128xf32>
    %cst_32 = arith.constant 5.000000e-01 : f32
    %132 = vector.broadcast %cst_32 : f32 to vector<2x128xf32>
    %133 = arith.addf %131, %132 : vector<2x128xf32>
    %134 = vector.extract_strided_slice %133 {offsets = [0, 0], sizes = [2, 32], strides = [1, 1]} : vector<2x128xf32> to vector<2x32xf32>
    %135 = vector.extract_strided_slice %133 {offsets = [0, 32], sizes = [2, 32], strides = [1, 1]} : vector<2x128xf32> to vector<2x32xf32>
    %136 = vector.extract_strided_slice %129 {offsets = [0, 64], sizes = [2, 32], strides = [1, 1]} : vector<2x128xf32> to vector<2x32xf32>
    %137 = vector.extract_strided_slice %133 {offsets = [0, 96], sizes = [2, 32], strides = [1, 1]} : vector<2x128xf32> to vector<2x32xf32>
    %138 = arith.mulf %135, %101 : vector<2x32xf32>
    %139 = arith.mulf %134, %136 : vector<2x32xf32>
    %140 = arith.addf %138, %139 : vector<2x32xf32>
    %141 = math.tanh %140 : vector<2x32xf32>
    %142 = arith.mulf %137, %141 : vector<2x32xf32>
    %143 = arith.truncf %142 : vector<2x32xf32> to vector<2x32xbf16>
    %cst_33 = arith.constant dense<0.000000e+00> : vector<2x8xf32>
    %144 = tpu.matmul %143, %1, %cst_33 {dimension_numbers = #tpu.dot_dimension_numbers<[1], [0], [0], [1], [0, 0, 1, 1], [], []>} : vector<2x32xbf16>, vector<32x8xbf16>, vector<2x8xf32> -> vector<2x8xf32>
    %145 = vector.extract_strided_slice %127 {offsets = [0, 128], sizes = [2, 8], strides = [1, 1]} : vector<2x136xf32> to vector<2x8xf32>
    %146 = arith.addf %144, %145 : vector<2x8xf32>
    %147 = math.tanh %146 : vector<2x8xf32>
    %cst_34 = arith.constant 5.000000e-01 : f32
    %148 = vector.broadcast %cst_34 : f32 to vector<2x8xf32>
    %149 = arith.mulf %148, %147 : vector<2x8xf32>
    %cst_35 = arith.constant 5.000000e-01 : f32
    %150 = vector.broadcast %cst_35 : f32 to vector<2x8xf32>
    %151 = arith.addf %149, %150 : vector<2x8xf32>
    %152 = vector.extract_strided_slice %151 {offsets = [0, 0], sizes = [2, 2], strides = [1, 1]} : vector<2x8xf32> to vector<2x2xf32>
    %153 = vector.extract_strided_slice %151 {offsets = [0, 2], sizes = [2, 2], strides = [1, 1]} : vector<2x8xf32> to vector<2x2xf32>
    %154 = vector.extract_strided_slice %147 {offsets = [0, 4], sizes = [2, 2], strides = [1, 1]} : vector<2x8xf32> to vector<2x2xf32>
    %155 = vector.extract_strided_slice %151 {offsets = [0, 6], sizes = [2, 2], strides = [1, 1]} : vector<2x8xf32> to vector<2x2xf32>
    %156 = arith.mulf %153, %119 : vector<2x2xf32>
    %157 = arith.mulf %152, %154 : vector<2x2xf32>
    %158 = arith.addf %156, %157 : vector<2x2xf32>
    %159 = math.tanh %158 : vector<2x2xf32>
    %160 = arith.mulf %155, %159 : vector<2x2xf32>
    %161 = vector.extract_strided_slice %160 {offsets = [0, 0], sizes = [2, 1], strides = [1, 1]} : vector<2x2xf32> to vector<2x1xf32>
    %162 = vector.extract_strided_slice %160 {offsets = [0, 1], sizes = [2, 1], strides = [1, 1]} : vector<2x2xf32> to vector<2x1xf32>
    %c0_36 = arith.constant 0 : index
    %c4 = arith.constant 4 : index
    %163 = vector.load %arg0[%c0_36, %c4] : memref<2x8xf32, #tpu.memory_space<vmem>>, vector<2x1xf32>
    %164 = tpu.concatenate %142, %160, %163, %6 in 1 : vector<2x32xf32>, vector<2x2xf32>, vector<2x1xf32>, vector<2x1xf32> -> vector<2x36xf32>
    %165 = arith.truncf %164 : vector<2x36xf32> to vector<2x36xbf16>
    %cst_37 = arith.constant dense<0.000000e+00> : vector<2x136xf32>
    %166 = tpu.matmul %165, %0, %cst_37 {dimension_numbers = #tpu.dot_dimension_numbers<[1], [0], [0], [1], [0, 0, 1, 1], [], []>} : vector<2x36xbf16>, vector<36x136xbf16>, vector<2x136xf32> -> vector<2x136xf32>
    %167 = vector.extract_strided_slice %166 {offsets = [0, 0], sizes = [2, 128], strides = [1, 1]} : vector<2x136xf32> to vector<2x128xf32>
    %168 = math.tanh %167 : vector<2x128xf32>
    %cst_38 = arith.constant 5.000000e-01 : f32
    %169 = vector.broadcast %cst_38 : f32 to vector<2x128xf32>
    %170 = arith.mulf %169, %168 : vector<2x128xf32>
    %cst_39 = arith.constant 5.000000e-01 : f32
    %171 = vector.broadcast %cst_39 : f32 to vector<2x128xf32>
    %172 = arith.addf %170, %171 : vector<2x128xf32>
    %173 = vector.extract_strided_slice %172 {offsets = [0, 0], sizes = [2, 32], strides = [1, 1]} : vector<2x128xf32> to vector<2x32xf32>
    %174 = vector.extract_strided_slice %172 {offsets = [0, 32], sizes = [2, 32], strides = [1, 1]} : vector<2x128xf32> to vector<2x32xf32>
    %175 = vector.extract_strided_slice %168 {offsets = [0, 64], sizes = [2, 32], strides = [1, 1]} : vector<2x128xf32> to vector<2x32xf32>
    %176 = vector.extract_strided_slice %172 {offsets = [0, 96], sizes = [2, 32], strides = [1, 1]} : vector<2x128xf32> to vector<2x32xf32>
    %177 = arith.mulf %174, %140 : vector<2x32xf32>
    %178 = arith.mulf %173, %175 : vector<2x32xf32>
    %179 = arith.addf %177, %178 : vector<2x32xf32>
    %180 = math.tanh %179 : vector<2x32xf32>
    %181 = arith.mulf %176, %180 : vector<2x32xf32>
    %182 = arith.truncf %181 : vector<2x32xf32> to vector<2x32xbf16>
    %cst_40 = arith.constant dense<0.000000e+00> : vector<2x8xf32>
    %183 = tpu.matmul %182, %1, %cst_40 {dimension_numbers = #tpu.dot_dimension_numbers<[1], [0], [0], [1], [0, 0, 1, 1], [], []>} : vector<2x32xbf16>, vector<32x8xbf16>, vector<2x8xf32> -> vector<2x8xf32>
    %184 = vector.extract_strided_slice %166 {offsets = [0, 128], sizes = [2, 8], strides = [1, 1]} : vector<2x136xf32> to vector<2x8xf32>
    %185 = arith.addf %183, %184 : vector<2x8xf32>
    %186 = math.tanh %185 : vector<2x8xf32>
    %cst_41 = arith.constant 5.000000e-01 : f32
    %187 = vector.broadcast %cst_41 : f32 to vector<2x8xf32>
    %188 = arith.mulf %187, %186 : vector<2x8xf32>
    %cst_42 = arith.constant 5.000000e-01 : f32
    %189 = vector.broadcast %cst_42 : f32 to vector<2x8xf32>
    %190 = arith.addf %188, %189 : vector<2x8xf32>
    %191 = vector.extract_strided_slice %190 {offsets = [0, 0], sizes = [2, 2], strides = [1, 1]} : vector<2x8xf32> to vector<2x2xf32>
    %192 = vector.extract_strided_slice %190 {offsets = [0, 2], sizes = [2, 2], strides = [1, 1]} : vector<2x8xf32> to vector<2x2xf32>
    %193 = vector.extract_strided_slice %186 {offsets = [0, 4], sizes = [2, 2], strides = [1, 1]} : vector<2x8xf32> to vector<2x2xf32>
    %194 = vector.extract_strided_slice %190 {offsets = [0, 6], sizes = [2, 2], strides = [1, 1]} : vector<2x8xf32> to vector<2x2xf32>
    %195 = arith.mulf %192, %158 : vector<2x2xf32>
    %196 = arith.mulf %191, %193 : vector<2x2xf32>
    %197 = arith.addf %195, %196 : vector<2x2xf32>
    %198 = math.tanh %197 : vector<2x2xf32>
    %199 = arith.mulf %194, %198 : vector<2x2xf32>
    %200 = vector.extract_strided_slice %199 {offsets = [0, 0], sizes = [2, 1], strides = [1, 1]} : vector<2x2xf32> to vector<2x1xf32>
    %201 = vector.extract_strided_slice %199 {offsets = [0, 1], sizes = [2, 1], strides = [1, 1]} : vector<2x2xf32> to vector<2x1xf32>
    %c0_43 = arith.constant 0 : index
    %c5 = arith.constant 5 : index
    %202 = vector.load %arg0[%c0_43, %c5] : memref<2x8xf32, #tpu.memory_space<vmem>>, vector<2x1xf32>
    %203 = tpu.concatenate %181, %199, %202, %6 in 1 : vector<2x32xf32>, vector<2x2xf32>, vector<2x1xf32>, vector<2x1xf32> -> vector<2x36xf32>
    %204 = arith.truncf %203 : vector<2x36xf32> to vector<2x36xbf16>
    %cst_44 = arith.constant dense<0.000000e+00> : vector<2x136xf32>
    %205 = tpu.matmul %204, %0, %cst_44 {dimension_numbers = #tpu.dot_dimension_numbers<[1], [0], [0], [1], [0, 0, 1, 1], [], []>} : vector<2x36xbf16>, vector<36x136xbf16>, vector<2x136xf32> -> vector<2x136xf32>
    %206 = vector.extract_strided_slice %205 {offsets = [0, 0], sizes = [2, 128], strides = [1, 1]} : vector<2x136xf32> to vector<2x128xf32>
    %207 = math.tanh %206 : vector<2x128xf32>
    %cst_45 = arith.constant 5.000000e-01 : f32
    %208 = vector.broadcast %cst_45 : f32 to vector<2x128xf32>
    %209 = arith.mulf %208, %207 : vector<2x128xf32>
    %cst_46 = arith.constant 5.000000e-01 : f32
    %210 = vector.broadcast %cst_46 : f32 to vector<2x128xf32>
    %211 = arith.addf %209, %210 : vector<2x128xf32>
    %212 = vector.extract_strided_slice %211 {offsets = [0, 0], sizes = [2, 32], strides = [1, 1]} : vector<2x128xf32> to vector<2x32xf32>
    %213 = vector.extract_strided_slice %211 {offsets = [0, 32], sizes = [2, 32], strides = [1, 1]} : vector<2x128xf32> to vector<2x32xf32>
    %214 = vector.extract_strided_slice %207 {offsets = [0, 64], sizes = [2, 32], strides = [1, 1]} : vector<2x128xf32> to vector<2x32xf32>
    %215 = vector.extract_strided_slice %211 {offsets = [0, 96], sizes = [2, 32], strides = [1, 1]} : vector<2x128xf32> to vector<2x32xf32>
    %216 = arith.mulf %213, %179 : vector<2x32xf32>
    %217 = arith.mulf %212, %214 : vector<2x32xf32>
    %218 = arith.addf %216, %217 : vector<2x32xf32>
    %219 = math.tanh %218 : vector<2x32xf32>
    %220 = arith.mulf %215, %219 : vector<2x32xf32>
    %221 = arith.truncf %220 : vector<2x32xf32> to vector<2x32xbf16>
    %cst_47 = arith.constant dense<0.000000e+00> : vector<2x8xf32>
    %222 = tpu.matmul %221, %1, %cst_47 {dimension_numbers = #tpu.dot_dimension_numbers<[1], [0], [0], [1], [0, 0, 1, 1], [], []>} : vector<2x32xbf16>, vector<32x8xbf16>, vector<2x8xf32> -> vector<2x8xf32>
    %223 = vector.extract_strided_slice %205 {offsets = [0, 128], sizes = [2, 8], strides = [1, 1]} : vector<2x136xf32> to vector<2x8xf32>
    %224 = arith.addf %222, %223 : vector<2x8xf32>
    %225 = math.tanh %224 : vector<2x8xf32>
    %cst_48 = arith.constant 5.000000e-01 : f32
    %226 = vector.broadcast %cst_48 : f32 to vector<2x8xf32>
    %227 = arith.mulf %226, %225 : vector<2x8xf32>
    %cst_49 = arith.constant 5.000000e-01 : f32
    %228 = vector.broadcast %cst_49 : f32 to vector<2x8xf32>
    %229 = arith.addf %227, %228 : vector<2x8xf32>
    %230 = vector.extract_strided_slice %229 {offsets = [0, 0], sizes = [2, 2], strides = [1, 1]} : vector<2x8xf32> to vector<2x2xf32>
    %231 = vector.extract_strided_slice %229 {offsets = [0, 2], sizes = [2, 2], strides = [1, 1]} : vector<2x8xf32> to vector<2x2xf32>
    %232 = vector.extract_strided_slice %225 {offsets = [0, 4], sizes = [2, 2], strides = [1, 1]} : vector<2x8xf32> to vector<2x2xf32>
    %233 = vector.extract_strided_slice %229 {offsets = [0, 6], sizes = [2, 2], strides = [1, 1]} : vector<2x8xf32> to vector<2x2xf32>
    %234 = arith.mulf %231, %197 : vector<2x2xf32>
    %235 = arith.mulf %230, %232 : vector<2x2xf32>
    %236 = arith.addf %234, %235 : vector<2x2xf32>
    %237 = math.tanh %236 : vector<2x2xf32>
    %238 = arith.mulf %233, %237 : vector<2x2xf32>
    %239 = vector.extract_strided_slice %238 {offsets = [0, 0], sizes = [2, 1], strides = [1, 1]} : vector<2x2xf32> to vector<2x1xf32>
    %240 = vector.extract_strided_slice %238 {offsets = [0, 1], sizes = [2, 1], strides = [1, 1]} : vector<2x2xf32> to vector<2x1xf32>
    %c0_50 = arith.constant 0 : index
    %c6 = arith.constant 6 : index
    %241 = vector.load %arg0[%c0_50, %c6] : memref<2x8xf32, #tpu.memory_space<vmem>>, vector<2x1xf32>
    %242 = tpu.concatenate %220, %238, %241, %6 in 1 : vector<2x32xf32>, vector<2x2xf32>, vector<2x1xf32>, vector<2x1xf32> -> vector<2x36xf32>
    %243 = arith.truncf %242 : vector<2x36xf32> to vector<2x36xbf16>
    %cst_51 = arith.constant dense<0.000000e+00> : vector<2x136xf32>
    %244 = tpu.matmul %243, %0, %cst_51 {dimension_numbers = #tpu.dot_dimension_numbers<[1], [0], [0], [1], [0, 0, 1, 1], [], []>} : vector<2x36xbf16>, vector<36x136xbf16>, vector<2x136xf32> -> vector<2x136xf32>
    %245 = vector.extract_strided_slice %244 {offsets = [0, 0], sizes = [2, 128], strides = [1, 1]} : vector<2x136xf32> to vector<2x128xf32>
    %246 = math.tanh %245 : vector<2x128xf32>
    %cst_52 = arith.constant 5.000000e-01 : f32
    %247 = vector.broadcast %cst_52 : f32 to vector<2x128xf32>
    %248 = arith.mulf %247, %246 : vector<2x128xf32>
    %cst_53 = arith.constant 5.000000e-01 : f32
    %249 = vector.broadcast %cst_53 : f32 to vector<2x128xf32>
    %250 = arith.addf %248, %249 : vector<2x128xf32>
    %251 = vector.extract_strided_slice %250 {offsets = [0, 0], sizes = [2, 32], strides = [1, 1]} : vector<2x128xf32> to vector<2x32xf32>
    %252 = vector.extract_strided_slice %250 {offsets = [0, 32], sizes = [2, 32], strides = [1, 1]} : vector<2x128xf32> to vector<2x32xf32>
    %253 = vector.extract_strided_slice %246 {offsets = [0, 64], sizes = [2, 32], strides = [1, 1]} : vector<2x128xf32> to vector<2x32xf32>
    %254 = vector.extract_strided_slice %250 {offsets = [0, 96], sizes = [2, 32], strides = [1, 1]} : vector<2x128xf32> to vector<2x32xf32>
    %255 = arith.mulf %252, %218 : vector<2x32xf32>
    %256 = arith.mulf %251, %253 : vector<2x32xf32>
    %257 = arith.addf %255, %256 : vector<2x32xf32>
    %258 = math.tanh %257 : vector<2x32xf32>
    %259 = arith.mulf %254, %258 : vector<2x32xf32>
    %260 = arith.truncf %259 : vector<2x32xf32> to vector<2x32xbf16>
    %cst_54 = arith.constant dense<0.000000e+00> : vector<2x8xf32>
    %261 = tpu.matmul %260, %1, %cst_54 {dimension_numbers = #tpu.dot_dimension_numbers<[1], [0], [0], [1], [0, 0, 1, 1], [], []>} : vector<2x32xbf16>, vector<32x8xbf16>, vector<2x8xf32> -> vector<2x8xf32>
    %262 = vector.extract_strided_slice %244 {offsets = [0, 128], sizes = [2, 8], strides = [1, 1]} : vector<2x136xf32> to vector<2x8xf32>
    %263 = arith.addf %261, %262 : vector<2x8xf32>
    %264 = math.tanh %263 : vector<2x8xf32>
    %cst_55 = arith.constant 5.000000e-01 : f32
    %265 = vector.broadcast %cst_55 : f32 to vector<2x8xf32>
    %266 = arith.mulf %265, %264 : vector<2x8xf32>
    %cst_56 = arith.constant 5.000000e-01 : f32
    %267 = vector.broadcast %cst_56 : f32 to vector<2x8xf32>
    %268 = arith.addf %266, %267 : vector<2x8xf32>
    %269 = vector.extract_strided_slice %268 {offsets = [0, 0], sizes = [2, 2], strides = [1, 1]} : vector<2x8xf32> to vector<2x2xf32>
    %270 = vector.extract_strided_slice %268 {offsets = [0, 2], sizes = [2, 2], strides = [1, 1]} : vector<2x8xf32> to vector<2x2xf32>
    %271 = vector.extract_strided_slice %264 {offsets = [0, 4], sizes = [2, 2], strides = [1, 1]} : vector<2x8xf32> to vector<2x2xf32>
    %272 = vector.extract_strided_slice %268 {offsets = [0, 6], sizes = [2, 2], strides = [1, 1]} : vector<2x8xf32> to vector<2x2xf32>
    %273 = arith.mulf %270, %236 : vector<2x2xf32>
    %274 = arith.mulf %269, %271 : vector<2x2xf32>
    %275 = arith.addf %273, %274 : vector<2x2xf32>
    %276 = math.tanh %275 : vector<2x2xf32>
    %277 = arith.mulf %272, %276 : vector<2x2xf32>
    %278 = vector.extract_strided_slice %277 {offsets = [0, 0], sizes = [2, 1], strides = [1, 1]} : vector<2x2xf32> to vector<2x1xf32>
    %279 = vector.extract_strided_slice %277 {offsets = [0, 1], sizes = [2, 1], strides = [1, 1]} : vector<2x2xf32> to vector<2x1xf32>
    %c0_57 = arith.constant 0 : index
    %c7 = arith.constant 7 : index
    %280 = vector.load %arg0[%c0_57, %c7] : memref<2x8xf32, #tpu.memory_space<vmem>>, vector<2x1xf32>
    %281 = tpu.concatenate %259, %277, %280, %6 in 1 : vector<2x32xf32>, vector<2x2xf32>, vector<2x1xf32>, vector<2x1xf32> -> vector<2x36xf32>
    %282 = arith.truncf %281 : vector<2x36xf32> to vector<2x36xbf16>
    %cst_58 = arith.constant dense<0.000000e+00> : vector<2x136xf32>
    %283 = tpu.matmul %282, %0, %cst_58 {dimension_numbers = #tpu.dot_dimension_numbers<[1], [0], [0], [1], [0, 0, 1, 1], [], []>} : vector<2x36xbf16>, vector<36x136xbf16>, vector<2x136xf32> -> vector<2x136xf32>
    %284 = vector.extract_strided_slice %283 {offsets = [0, 0], sizes = [2, 128], strides = [1, 1]} : vector<2x136xf32> to vector<2x128xf32>
    %285 = math.tanh %284 : vector<2x128xf32>
    %cst_59 = arith.constant 5.000000e-01 : f32
    %286 = vector.broadcast %cst_59 : f32 to vector<2x128xf32>
    %287 = arith.mulf %286, %285 : vector<2x128xf32>
    %cst_60 = arith.constant 5.000000e-01 : f32
    %288 = vector.broadcast %cst_60 : f32 to vector<2x128xf32>
    %289 = arith.addf %287, %288 : vector<2x128xf32>
    %290 = vector.extract_strided_slice %289 {offsets = [0, 0], sizes = [2, 32], strides = [1, 1]} : vector<2x128xf32> to vector<2x32xf32>
    %291 = vector.extract_strided_slice %289 {offsets = [0, 32], sizes = [2, 32], strides = [1, 1]} : vector<2x128xf32> to vector<2x32xf32>
    %292 = vector.extract_strided_slice %285 {offsets = [0, 64], sizes = [2, 32], strides = [1, 1]} : vector<2x128xf32> to vector<2x32xf32>
    %293 = vector.extract_strided_slice %289 {offsets = [0, 96], sizes = [2, 32], strides = [1, 1]} : vector<2x128xf32> to vector<2x32xf32>
    %294 = arith.mulf %291, %257 : vector<2x32xf32>
    %295 = arith.mulf %290, %292 : vector<2x32xf32>
    %296 = arith.addf %294, %295 : vector<2x32xf32>
    %297 = math.tanh %296 : vector<2x32xf32>
    %298 = arith.mulf %293, %297 : vector<2x32xf32>
    %299 = arith.truncf %298 : vector<2x32xf32> to vector<2x32xbf16>
    %cst_61 = arith.constant dense<0.000000e+00> : vector<2x8xf32>
    %300 = tpu.matmul %299, %1, %cst_61 {dimension_numbers = #tpu.dot_dimension_numbers<[1], [0], [0], [1], [0, 0, 1, 1], [], []>} : vector<2x32xbf16>, vector<32x8xbf16>, vector<2x8xf32> -> vector<2x8xf32>
    %301 = vector.extract_strided_slice %283 {offsets = [0, 128], sizes = [2, 8], strides = [1, 1]} : vector<2x136xf32> to vector<2x8xf32>
    %302 = arith.addf %300, %301 : vector<2x8xf32>
    %303 = math.tanh %302 : vector<2x8xf32>
    %cst_62 = arith.constant 5.000000e-01 : f32
    %304 = vector.broadcast %cst_62 : f32 to vector<2x8xf32>
    %305 = arith.mulf %304, %303 : vector<2x8xf32>
    %cst_63 = arith.constant 5.000000e-01 : f32
    %306 = vector.broadcast %cst_63 : f32 to vector<2x8xf32>
    %307 = arith.addf %305, %306 : vector<2x8xf32>
    %308 = vector.extract_strided_slice %307 {offsets = [0, 0], sizes = [2, 2], strides = [1, 1]} : vector<2x8xf32> to vector<2x2xf32>
    %309 = vector.extract_strided_slice %307 {offsets = [0, 2], sizes = [2, 2], strides = [1, 1]} : vector<2x8xf32> to vector<2x2xf32>
    %310 = vector.extract_strided_slice %303 {offsets = [0, 4], sizes = [2, 2], strides = [1, 1]} : vector<2x8xf32> to vector<2x2xf32>
    %311 = vector.extract_strided_slice %307 {offsets = [0, 6], sizes = [2, 2], strides = [1, 1]} : vector<2x8xf32> to vector<2x2xf32>
    %312 = arith.mulf %309, %275 : vector<2x2xf32>
    %313 = arith.mulf %308, %310 : vector<2x2xf32>
    %314 = arith.addf %312, %313 : vector<2x2xf32>
    %315 = math.tanh %314 : vector<2x2xf32>
    %316 = arith.mulf %311, %315 : vector<2x2xf32>
    %317 = vector.extract_strided_slice %316 {offsets = [0, 0], sizes = [2, 1], strides = [1, 1]} : vector<2x2xf32> to vector<2x1xf32>
    %318 = vector.extract_strided_slice %316 {offsets = [0, 1], sizes = [2, 1], strides = [1, 1]} : vector<2x2xf32> to vector<2x1xf32>
    %319 = tpu.concatenate %44, %83, %122, %161, %200, %239, %278, %317 in 1 : vector<2x1xf32>, vector<2x1xf32>, vector<2x1xf32>, vector<2x1xf32>, vector<2x1xf32>, vector<2x1xf32>, vector<2x1xf32>, vector<2x1xf32> -> vector<2x8xf32>
    %c0_64 = arith.constant 0 : index
    %c0_65 = arith.constant 0 : index
    %320 = vector.load %arg3[%c0_64, %c0_65] : memref<2x8xf32, #tpu.memory_space<vmem>>, vector<2x8xf32>
    tpu.vector_store %arg3[%c0_64, %c0_65], %319 {strides = array<i32>} : memref<2x8xf32, #tpu.memory_space<vmem>>, vector<2x8xf32>,
    %321 = tpu.concatenate %45, %84, %123, %162, %201, %240, %279, %318 in 1 : vector<2x1xf32>, vector<2x1xf32>, vector<2x1xf32>, vector<2x1xf32>, vector<2x1xf32>, vector<2x1xf32>, vector<2x1xf32>, vector<2x1xf32> -> vector<2x8xf32>
    %c0_66 = arith.constant 0 : index
    %c0_67 = arith.constant 0 : index
    %322 = vector.load %arg4[%c0_66, %c0_67] : memref<2x8xf32, #tpu.memory_space<vmem>>, vector<2x8xf32>
    tpu.vector_store %arg4[%c0_66, %c0_67], %321 {strides = array<i32>} : memref<2x8xf32, #tpu.memory_space<vmem>>, vector<2x8xf32>,
    return
  }
}

</mosaic_0001>

<llo_original>
// kernel: lstm_ae_pred_forward.1
$region0: #{lstm_ae_pred_forward.1}
  #allocation0 [shape = 'u32[]', space=smem, size = 0x4, offset = 0x4, fixed_abs, tag = 'smem constant byte address 0x4 - core index']
  #allocation1 [shape = 'u32[144,128]{1,0:T(1,128)}', space=vmem, size = 0x12000, scoped, tag = 'internal scratch']
  %s0 = inlined_call_operand.vmem [shape: f32[2,8], index: 0, kind: input, shape index: {}]
  %s1 = inlined_call_operand.hbm [shape: bf16[36,136], index: 1, kind: input, shape index: {}]
  %s2 = inlined_call_operand.vmem [shape: bf16[32,8], index: 2, kind: input, shape index: {}]
  %s3 = inlined_call_operand.hbm [shape: f32[2,8], index: 3, kind: output, shape index: {0}]
  %s4 = inlined_call_operand.hbm [shape: f32[2,8], index: 4, kind: output, shape index: {1}]
  %5 = xla_tuple %s3, %s4
  %s6 = sld [smem:[#allocation0]]
  $region34: #{lstm_ae_pred_forward.1} parent=0
    _
  %s8 = ssub.s32 1, %s6
  %s9 = scalar_select 0, %s8, %s6
  $region1: #{lstm_ae_pred_forward.1} parent=0
    #allocation2 [shape = 'u8[20480]{0}', space=vmem, size = 0x5000, scoped, tag = 'input window, operand 1, single buffered']
    #allocation3 [shape = 's32[1]{0}', space=sflag, size = 0x4, scoped, tag = 'scoped memory for lstm_ae_pred_forward.1']
    #allocation4 [shape = 's32[1]{0}', space=sflag, size = 0x4, scoped, tag = 'scoped memory for lstm_ae_pred_forward.1']
    #allocation5 [shape = 'u8[1024]{0}', space=vmem, size = 0x400, scoped, tag = 'output window, operand 0, single buffered']
    #allocation6 [shape = 'u8[1024]{0}', space=vmem, size = 0x400, scoped, tag = 'output window, operand 1, single buffered']
    #allocation7 [shape = 's32[1]{0}', space=sflag, size = 0x4, scoped, tag = 'scoped memory for lstm_ae_pred_forward.1']
    %10 = vsyncpa [#allocation3], 0
    %11 = vsyncpa [#allocation4], 0
    %12 = vsyncpa [#allocation7], 0
    // Predicated region
    $region2: #{lstm_ae_pred_forward.1} parent=1 // pred_check
      _
    $region3: #{lstm_ae_pred_forward.1} parent=1 // pred_check_branch
      %14 = sbr.rel (0) target = $region5
    $region4: #{lstm_ae_pred_forward.1} parent=1 // pred_region
      _
    $region5: #{lstm_ae_pred_forward.1} parent=1 // pred_fallthru
      _
    // Predicated region
    $region6: #{lstm_ae_pred_forward.1} parent=1 // pred_check
      _
    $region7: #{lstm_ae_pred_forward.1} parent=1 // pred_check_branch
      %16 = sbr.rel (0) target = $region9
    $region8: #{lstm_ae_pred_forward.1} parent=1 // pred_region
      %s18 = ssub.s32 640, 640
      %19 = vsyncadd [#allocation3], %s18
      %s20 = sshll.u32 [#allocation2], 4
      %s21 = int_to_ptr.vmem [resolvable:$true] %s20
      %26 = dma.hbm_to_vmem [thread:$0]  %s1, 640, %s21, [#allocation3], 128, 128, 8
    $region9: #{lstm_ae_pred_forward.1} parent=1 // pred_fallthru
      _
    // Predicated region
    $region10: #{lstm_ae_pred_forward.1} parent=1 // pred_check
      _
    $region11: #{lstm_ae_pred_forward.1} parent=1 // pred_check_branch
      %28 = sbr.rel (0) target = $region13
    $region12: #{lstm_ae_pred_forward.1} parent=1 // pred_region
      _
    $region13: #{lstm_ae_pred_forward.1} parent=1 // pred_fallthru
      _
    // Predicated region
    $region14: #{lstm_ae_pred_forward.1} parent=1 // pred_check
      _
    $region15: #{lstm_ae_pred_forward.1} parent=1 // pred_check_branch
      %30 = sbr.rel (0) target = $region17
    $region16: #{lstm_ae_pred_forward.1} parent=1 // pred_region
      %31 = dma.done [#allocation3], 640
    $region17: #{lstm_ae_pred_forward.1} parent=1 // pred_fallthru
      _
    %v33 = vld [vmem:[#allocation2] sm:$0xff]
    %v34 = vld [vmem:[#allocation2 + $0x8] sm:$0xff]
    %v35 = vld [vmem:[#allocation2 + $0x10] sm:$0xff]
    %v36 = vld [vmem:[#allocation2 + $0x18] sm:$0xff]
    %v37 = vld [vmem:[#allocation2 + $0x20] sm:$0x33]
    %v38 = vld [vmem:[%s2] sm:$0xf]
    %v39 = vld [vmem:[%s2 + $0x4] sm:$0xf]
    %v40 = vld [vmem:[%s2 + $0x8] sm:$0xf]
    %v41 = vld [vmem:[%s2 + $0xc] sm:$0xf]
    %v42 = vld [vmem:[%s0] sm:$0x3]
    %44 = vrot.lane.b32.xlu0 %v42, 34
    %v45 = vpop.permute.xlu0 %44
    %vm47 = vcmask 277504
    %v48 = vsel %vm47, 0.0, %v45
    %vm49 = vcmask 285696
    %v50 = vsel %vm49, %v48, 1.0
    %v51 = vpack.c.bf16 %v50, %v50
    %v57 = vunpack.c.l.b16 %v33
    %v58 = vunpack.c.h.b16 %v33
    %v59 = vunpack.c.l.b16 %v34
    %v60 = vunpack.c.h.b16 %v34
    %v61 = vunpack.c.l.b16 %v35
    %v62 = vunpack.c.h.b16 %v35
    %v63 = vunpack.c.l.b16 %v36
    %v64 = vunpack.c.h.b16 %v36
    %v65 = vunpack.c.l.b16 %v37
    %v66 = vunpack.c.h.b16 %v37
    %v67 = vpack.c.b16 %v59, %v57
    %v68 = vpack.c.b16 %v60, %v58
    %v69 = vpack.c.b16 %v63, %v61
    %v70 = vpack.c.b16 %v64, %v62
    %v71 = vpack.c.b16 %v65, %v65
    %v72 = vpack.c.b16 %v66, %v66
    %vm77 = vcmask 293888
    %v79 = vsel %vm77, %v51, 0
    %vm81 = vcmask 1041408
    %v83 = vsel %vm81, %v71, 0
    %v86 = vsel %vm81, %v72, 0
    %88 = vmatprep.subr.bf16.mxu0 0
    %89 = vmatpush1.bf16.msra.mxu0 0
    %90 = vmatprep.subr.bf16.mxu0 0
    %91 = vmatpush1.bf16.msra.mxu0 0
    %92 = vmatprep.subr.bf16.mxu0 0
    %93 = vmatpush1.bf16.msra.mxu0 0
    %94 = vmatprep.subr.bf16.mxu0 0
    %95 = vmatpush1.bf16.msra.mxu0 0
    %96 = vmatprep.subr.bf16.mxu0 0
    %97 = vmatpush1.bf16.msra.mxu0 0
    %98 = vmatprep.subr.bf16.mxu0 %v86
    %99 = vmatpush1.bf16.msra.mxu0 %v83
    %100 = vmatprep.subr.bf16.mxu0 %v70
    %101 = vmatpush1.bf16.msra.mxu0 %v69
    %102 = vmatprep.subr.bf16.mxu0 %v68
    %103 = vmatpush1.bf16.msra.mxu0 %v67
    %104 = vmatprep.subr.bf16.mxu0 0
    %105 = vmatpush2.bf16.msra.mxu0 0
    %106 = vmatprep.subr.bf16.mxu0 0
    %107 = vmatpush2.bf16.msra.mxu0 0
    %108 = vmatprep.subr.bf16.mxu0 0
    %109 = vmatpush2.bf16.msra.mxu0 0
    %110 = vmatprep.subr.bf16.mxu0 0
    %111 = vmatpush2.bf16.msra.mxu0 0
    %112 = vmatprep.subr.bf16.mxu0 0
    %113 = vmatpush2.bf16.msra.mxu0 0
    %114 = vmatprep.subr.bf16.mxu0 0
    %115 = vmatpush2.bf16.msra.mxu0 0
    %116 = vmatprep.subr.bf16.mxu0 0
    %117 = vmatpush2.bf16.msra.mxu0 0
    %118 = vmatprep.subr.bf16.mxu0 0
    %119 = vmatpush2.bf16.msra.mxu0 0
    %120 = vmatprep.mubr.bf16.mxu0 0
    %121 = vmatmul.mubr.bf16.gmra.mxu0 %v79
    %v122 = vpop.f32.mrf.mxu0
    %v123 = vadd.f32 0.0, %v122
    %v124 = vpop.f32.mrf.mxu0
    %v125 = vadd.f32 0.0, %v124
    %v126 = vpop.f32.mrf.mxu0
    %v127 = vpop.f32.mrf.mxu0
    %128 = vdwg.mxu0
    %v129 = vtanh.pop %v123
    %v130 = vmul.f32 %v129, 0.5
    %v131 = vadd.f32 %v130, 0.5
    %v132 = vmul.f32 %v131, 0.0
    %134 = vrot.lane.b32.xlu0 %v129, 64
    %v135 = vpop.permute.xlu0 %134
    %v137 = vmul.f32 %v131, %v135
    %139 = vrot.lane.b32.xlu0 %v137, 32
    %v140 = vpop.permute.xlu0 %139
    %v142 = vadd.f32 %v132, %v140
    %v143 = vtanh.pop %v142
    %145 = vrot.lane.b32.xlu0 %v143, 64
    %v146 = vpop.permute.xlu0 %145
    %v148 = vmul.f32 %v131, %v146
    %v149 = vpack.c.bf16 %v148, %v148
    %151 = vrot.lane.b32.xlu0 %v149, 32
    %v152 = vpop.permute.xlu0 %151
    %v157 = vunpack.c.l.b16 %v38
    %v158 = vunpack.c.l.b16 %v39
    %v159 = vunpack.c.l.b16 %v40
    %v160 = vunpack.c.l.b16 %v41
    %v161 = vpack.c.b16 %v158, %v157
    %v162 = vpack.c.b16 %v160, %v159
    %vm165 = vcmask 261120
    %v167 = vsel %vm165, %v152, 0
    %169 = vmatprep.subr.bf16.mxu0 0
    %170 = vmatpush1.bf16.msra.mxu0 0
    %171 = vmatprep.subr.bf16.mxu0 0
    %172 = vmatpush1.bf16.msra.mxu0 0
    %173 = vmatprep.subr.bf16.mxu0 0
    %174 = vmatpush1.bf16.msra.mxu0 0
    %175 = vmatprep.subr.bf16.mxu0 0
    %176 = vmatpush1.bf16.msra.mxu0 0
    %177 = vmatprep.subr.bf16.mxu0 0
    %178 = vmatpush1.bf16.msra.mxu0 0
    %179 = vmatprep.subr.bf16.mxu0 0
    %180 = vmatpush1.bf16.msra.mxu0 0
    %181 = vmatprep.subr.bf16.mxu0 0
    %182 = vmatpush1.bf16.msra.mxu0 %v162
    %183 = vmatprep.subr.bf16.mxu0 0
    %184 = vmatpush1.bf16.msra.mxu0 %v161
    %185 = vmatprep.subr.bf16.mxu0 0
    %186 = vmatpush2.bf16.msra.mxu0 0
    %187 = vmatprep.subr.bf16.mxu0 0
    %188 = vmatpush2.bf16.msra.mxu0 0
    %189 = vmatprep.subr.bf16.mxu0 0
    %190 = vmatpush2.bf16.msra.mxu0 0
    %191 = vmatprep.subr.bf16.mxu0 0
    %192 = vmatpush2.bf16.msra.mxu0 0
    %193 = vmatprep.subr.bf16.mxu0 0
    %194 = vmatpush2.bf16.msra.mxu0 0
    %195 = vmatprep.subr.bf16.mxu0 0
    %196 = vmatpush2.bf16.msra.mxu0 0
    %197 = vmatprep.subr.bf16.mxu0 0
    %198 = vmatpush2.bf16.msra.mxu0 0
    %199 = vmatprep.subr.bf16.mxu0 0
    %200 = vmatpush2.bf16.msra.mxu0 0
    %201 = vmatprep.mubr.bf16.mxu0 0
    %202 = vmatmul.mubr.bf16.gmra.mxu0 %v167
    %v203 = vpop.f32.mrf.mxu0
    %v204 = vadd.f32 %v125, %v203
    %v205 = vpop.f32.mrf.mxu0
    %v206 = vpop.f32.mrf.mxu0
    %v207 = vpop.f32.mrf.mxu0
    %208 = vdwg.mxu0
    %v209 = vtanh.pop %v204
    %v210 = vmul.f32 %v209, 0.5
    %v211 = vadd.f32 %v210, 0.5
    %v212 = vmul.f32 %v211, 0.0
    %214 = vrot.lane.b32.xlu0 %v209, 124
    %v215 = vpop.permute.xlu0 %214
    %v217 = vmul.f32 %v211, %v215
    %219 = vrot.lane.b32.xlu0 %v217, 2
    %v220 = vpop.permute.xlu0 %219
    %v222 = vadd.f32 %v212, %v220
    %v223 = vtanh.pop %v222
    %225 = vrot.lane.b32.xlu0 %v223, 4
    %v226 = vpop.permute.xlu0 %225
    %v228 = vmul.f32 %v211, %v226
    %230 = vrot.lane.b32.xlu0 %v148, 32
    %v231 = vpop.permute.xlu0 %230
    %234 = vrot.lane.b32.xlu0 %v228, 26
    %v235 = vpop.permute.xlu0 %234
    %237 = vrot.lane.b32.xlu0 %v42, 33
    %v238 = vpop.permute.xlu0 %237
    %v240 = vsel %vm165, %v231, %v235
    %v241 = vsel %vm47, %v240, %v238
    %v242 = vsel %vm49, %v241, 1.0
    %v243 = vpack.c.bf16 %v242, %v242
    %v245 = vsel %vm77, %v243, 0
    %247 = vmatprep.subr.bf16.mxu0 0
    %248 = vmatpush1.bf16.msra.mxu0 0
    %249 = vmatprep.subr.bf16.mxu0 0
    %250 = vmatpush1.bf16.msra.mxu0 0
    %251 = vmatprep.subr.bf16.mxu0 0
    %252 = vmatpush1.bf16.msra.mxu0 0
    %253 = vmatprep.subr.bf16.mxu0 0
    %254 = vmatpush1.bf16.msra.mxu0 0
    %255 = vmatprep.subr.bf16.mxu0 0
    %256 = vmatpush1.bf16.msra.mxu0 0
    %257 = vmatprep.subr.bf16.mxu0 %v86
    %258 = vmatpush1.bf16.msra.mxu0 %v83
    %259 = vmatprep.subr.bf16.mxu0 %v70
    %260 = vmatpush1.bf16.msra.mxu0 %v69
    %261 = vmatprep.subr.bf16.mxu0 %v68
    %262 = vmatpush1.bf16.msra.mxu0 %v67
    %263 = vmatprep.subr.bf16.mxu0 0
    %264 = vmatpush2.bf16.msra.mxu0 0
    %265 = vmatprep.subr.bf16.mxu0 0
    %266 = vmatpush2.bf16.msra.mxu0 0
    %267 = vmatprep.subr.bf16.mxu0 0
    %268 = vmatpush2.bf16.msra.mxu0 0
    %269 = vmatprep.subr.bf16.mxu0 0
    %270 = vmatpush2.bf16.msra.mxu0 0
    %271 = vmatprep.subr.bf16.mxu0 0
    %272 = vmatpush2.bf16.msra.mxu0 0
    %273 = vmatprep.subr.bf16.mxu0 0
    %274 = vmatpush2.bf16.msra.mxu0 0
    %275 = vmatprep.subr.bf16.mxu0 0
    %276 = vmatpush2.bf16.msra.mxu0 0
    %277 = vmatprep.subr.bf16.mxu0 0
    %278 = vmatpush2.bf16.msra.mxu0 0
    %279 = vmatprep.mubr.bf16.mxu0 0
    %280 = vmatmul.mubr.bf16.gmra.mxu0 %v245
    %v281 = vpop.f32.mrf.mxu0
    %v282 = vadd.f32 0.0, %v281
    %v283 = vpop.f32.mrf.mxu0
    %v284 = vadd.f32 0.0, %v283
    %v285 = vpop.f32.mrf.mxu0
    %v286 = vpop.f32.mrf.mxu0
    %287 = vdwg.mxu0
    %v288 = vtanh.pop %v282
    %v289 = vmul.f32 %v288, 0.5
    %v290 = vadd.f32 %v289, 0.5
    %v291 = vmul.f32 %v290, %v142
    %293 = vrot.lane.b32.xlu0 %v288, 64
    %v294 = vpop.permute.xlu0 %293
    %v296 = vmul.f32 %v290, %v294
    %298 = vrot.lane.b32.xlu0 %v296, 32
    %v299 = vpop.permute.xlu0 %298
    %v301 = vadd.f32 %v291, %v299
    %v302 = vtanh.pop %v301
    %304 = vrot.lane.b32.xlu0 %v302, 64
    %v305 = vpop.permute.xlu0 %304
    %v307 = vmul.f32 %v290, %v305
    %v308 = vpack.c.bf16 %v307, %v307
    %310 = vrot.lane.b32.xlu0 %v308, 32
    %v311 = vpop.permute.xlu0 %310
    %v313 = vsel %vm165, %v311, 0
    %315 = vmatprep.subr.bf16.mxu0 0
    %316 = vmatpush1.bf16.msra.mxu0 0
    %317 = vmatprep.subr.bf16.mxu0 0
    %318 = vmatpush1.bf16.msra.mxu0 0
    %319 = vmatprep.subr.bf16.mxu0 0
    %320 = vmatpush1.bf16.msra.mxu0 0
    %321 = vmatprep.subr.bf16.mxu0 0
    %322 = vmatpush1.bf16.msra.mxu0 0
    %323 = vmatprep.subr.bf16.mxu0 0
    %324 = vmatpush1.bf16.msra.mxu0 0
    %325 = vmatprep.subr.bf16.mxu0 0
    %326 = vmatpush1.bf16.msra.mxu0 0
    %327 = vmatprep.subr.bf16.mxu0 0
    %328 = vmatpush1.bf16.msra.mxu0 %v162
    %329 = vmatprep.subr.bf16.mxu0 0
    %330 = vmatpush1.bf16.msra.mxu0 %v161
    %331 = vmatprep.subr.bf16.mxu0 0
    %332 = vmatpush2.bf16.msra.mxu0 0
    %333 = vmatprep.subr.bf16.mxu0 0
    %334 = vmatpush2.bf16.msra.mxu0 0
    %335 = vmatprep.subr.bf16.mxu0 0
    %336 = vmatpush2.bf16.msra.mxu0 0
    %337 = vmatprep.subr.bf16.mxu0 0
    %338 = vmatpush2.bf16.msra.mxu0 0
    %339 = vmatprep.subr.bf16.mxu0 0
    %340 = vmatpush2.bf16.msra.mxu0 0
    %341 = vmatprep.subr.bf16.mxu0 0
    %342 = vmatpush2.bf16.msra.mxu0 0
    %343 = vmatprep.subr.bf16.mxu0 0
    %344 = vmatpush2.bf16.msra.mxu0 0
    %345 = vmatprep.subr.bf16.mxu0 0
    %346 = vmatpush2.bf16.msra.mxu0 0
    %347 = vmatprep.mubr.bf16.mxu0 0
    %348 = vmatmul.mubr.bf16.gmra.mxu0 %v313
    %v349 = vpop.f32.mrf.mxu0
    %v350 = vadd.f32 %v284, %v349
    %v351 = vpop.f32.mrf.mxu0
    %v352 = vpop.f32.mrf.mxu0
    %v353 = vpop.f32.mrf.mxu0
    %354 = vdwg.mxu0
    %v355 = vtanh.pop %v350
    %v356 = vmul.f32 %v355, 0.5
    %v357 = vadd.f32 %v356, 0.5
    %v358 = vmul.f32 %v357, %v222
    %360 = vrot.lane.b32.xlu0 %v355, 124
    %v361 = vpop.permute.xlu0 %360
    %v363 = vmul.f32 %v357, %v361
    %365 = vrot.lane.b32.xlu0 %v363, 2
    %v366 = vpop.permute.xlu0 %365
    %v368 = vadd.f32 %v358, %v366
    %v369 = vtanh.pop %v368
    %371 = vrot.lane.b32.xlu0 %v369, 4
    %v372 = vpop.permute.xlu0 %371
    %v374 = vmul.f32 %v357, %v372
    %376 = vrot.lane.b32.xlu0 %v307, 32
    %v377 = vpop.permute.xlu0 %376
    %380 = vrot.lane.b32.xlu0 %v374, 26
    %v381 = vpop.permute.xlu0 %380
    %383 = vrot.lane.b32.xlu0 %v42, 32
    %v384 = vpop.permute.xlu0 %383
    %v386 = vsel %vm165, %v377, %v381
    %v387 = vsel %vm47, %v386, %v384
    %v388 = vsel %vm49, %v387, 1.0
    %v389 = vpack.c.bf16 %v388, %v388
    %v391 = vsel %vm77, %v389, 0
    %393 = vmatprep.subr.bf16.mxu0 0
    %394 = vmatpush1.bf16.msra.mxu0 0
    %395 = vmatprep.subr.bf16.mxu0 0
    %396 = vmatpush1.bf16.msra.mxu0 0
    %397 = vmatprep.subr.bf16.mxu0 0
    %398 = vmatpush1.bf16.msra.mxu0 0
    %399 = vmatprep.subr.bf16.mxu0 0
    %400 = vmatpush1.bf16.msra.mxu0 0
    %401 = vmatprep.subr.bf16.mxu0 0
    %402 = vmatpush1.bf16.msra.mxu0 0
    %403 = vmatprep.subr.bf16.mxu0 %v86
    %404 = vmatpush1.bf16.msra.mxu0 %v83
    %405 = vmatprep.subr.bf16.mxu0 %v70
    %406 = vmatpush1.bf16.msra.mxu0 %v69
    %407 = vmatprep.subr.bf16.mxu0 %v68
    %408 = vmatpush1.bf16.msra.mxu0 %v67
    %409 = vmatprep.subr.bf16.mxu0 0
    %410 = vmatpush2.bf16.msra.mxu0 0
    %411 = vmatprep.subr.bf16.mxu0 0
    %412 = vmatpush2.bf16.msra.mxu0 0
    %413 = vmatprep.subr.bf16.mxu0 0
    %414 = vmatpush2.bf16.msra.mxu0 0
    %415 = vmatprep.subr.bf16.mxu0 0
    %416 = vmatpush2.bf16.msra.mxu0 0
    %417 = vmatprep.subr.bf16.mxu0 0
    %418 = vmatpush2.bf16.msra.mxu0 0
    %419 = vmatprep.subr.bf16.mxu0 0
    %420 = vmatpush2.bf16.msra.mxu0 0
    %421 = vmatprep.subr.bf16.mxu0 0
    %422 = vmatpush2.bf16.msra.mxu0 0
    %423 = vmatprep.subr.bf16.mxu0 0
    %424 = vmatpush2.bf16.msra.mxu0 0
    %425 = vmatprep.mubr.bf16.mxu0 0
    %426 = vmatmul.mubr.bf16.gmra.mxu0 %v391
    %v427 = vpop.f32.mrf.mxu0
    %v428 = vadd.f32 0.0, %v427
    %v429 = vpop.f32.mrf.mxu0
    %v430 = vadd.f32 0.0, %v429
    %v431 = vpop.f32.mrf.mxu0
    %v432 = vpop.f32.mrf.mxu0
    %433 = vdwg.mxu0
    %v434 = vtanh.pop %v428
    %v435 = vmul.f32 %v434, 0.5
    %v436 = vadd.f32 %v435, 0.5
    %v437 = vmul.f32 %v436, %v301
    %439 = vrot.lane.b32.xlu0 %v434, 64
    %v440 = vpop.permute.xlu0 %439
    %v442 = vmul.f32 %v436, %v440
    %444 = vrot.lane.b32.xlu0 %v442, 32
    %v445 = vpop.permute.xlu0 %444
    %v447 = vadd.f32 %v437, %v445
    %v448 = vtanh.pop %v447
    %450 = vrot.lane.b32.xlu0 %v448, 64
    %v451 = vpop.permute.xlu0 %450
    %v453 = vmul.f32 %v436, %v451
    %v454 = vpack.c.bf16 %v453, %v453
    %456 = vrot.lane.b32.xlu0 %v454, 32
    %v457 = vpop.permute.xlu0 %456
    %v459 = vsel %vm165, %v457, 0
    %461 = vmatprep.subr.bf16.mxu0 0
    %462 = vmatpush1.bf16.msra.mxu0 0
    %463 = vmatprep.subr.bf16.mxu0 0
    %464 = vmatpush1.bf16.msra.mxu0 0
    %465 = vmatprep.subr.bf16.mxu0 0
    %466 = vmatpush1.bf16.msra.mxu0 0
    %467 = vmatprep.subr.bf16.mxu0 0
    %468 = vmatpush1.bf16.msra.mxu0 0
    %469 = vmatprep.subr.bf16.mxu0 0
    %470 = vmatpush1.bf16.msra.mxu0 0
    %471 = vmatprep.subr.bf16.mxu0 0
    %472 = vmatpush1.bf16.msra.mxu0 0
    %473 = vmatprep.subr.bf16.mxu0 0
    %474 = vmatpush1.bf16.msra.mxu0 %v162
    %475 = vmatprep.subr.bf16.mxu0 0
    %476 = vmatpush1.bf16.msra.mxu0 %v161
    %477 = vmatprep.subr.bf16.mxu0 0
    %478 = vmatpush2.bf16.msra.mxu0 0
    %479 = vmatprep.subr.bf16.mxu0 0
    %480 = vmatpush2.bf16.msra.mxu0 0
    %481 = vmatprep.subr.bf16.mxu0 0
    %482 = vmatpush2.bf16.msra.mxu0 0
    %483 = vmatprep.subr.bf16.mxu0 0
    %484 = vmatpush2.bf16.msra.mxu0 0
    %485 = vmatprep.subr.bf16.mxu0 0
    %486 = vmatpush2.bf16.msra.mxu0 0
    %487 = vmatprep.subr.bf16.mxu0 0
    %488 = vmatpush2.bf16.msra.mxu0 0
    %489 = vmatprep.subr.bf16.mxu0 0
    %490 = vmatpush2.bf16.msra.mxu0 0
    %491 = vmatprep.subr.bf16.mxu0 0
    %492 = vmatpush2.bf16.msra.mxu0 0
    %493 = vmatprep.mubr.bf16.mxu0 0
    %494 = vmatmul.mubr.bf16.gmra.mxu0 %v459
    %v495 = vpop.f32.mrf.mxu0
    %v496 = vadd.f32 %v430, %v495
    %v497 = vpop.f32.mrf.mxu0
    %v498 = vpop.f32.mrf.mxu0
    %v499 = vpop.f32.mrf.mxu0
    %500 = vdwg.mxu0
    %v501 = vtanh.pop %v496
    %v502 = vmul.f32 %v501, 0.5
    %v503 = vadd.f32 %v502, 0.5
    %v504 = vmul.f32 %v503, %v368
    %506 = vrot.lane.b32.xlu0 %v501, 124
    %v507 = vpop.permute.xlu0 %506
    %v509 = vmul.f32 %v503, %v507
    %511 = vrot.lane.b32.xlu0 %v509, 2
    %v512 = vpop.permute.xlu0 %511
    %v514 = vadd.f32 %v504, %v512
    %v515 = vtanh.pop %v514
    %517 = vrot.lane.b32.xlu0 %v515, 4
    %v518 = vpop.permute.xlu0 %517
    %v520 = vmul.f32 %v503, %v518
    %522 = vrot.lane.b32.xlu0 %v453, 32
    %v523 = vpop.permute.xlu0 %522
    %526 = vrot.lane.b32.xlu0 %v520, 26
    %v527 = vpop.permute.xlu0 %526
    %529 = vrot.lane.b32.xlu0 %v42, 31
    %v530 = vpop.permute.xlu0 %529
    %v532 = vsel %vm165, %v523, %v527
    %v533 = vsel %vm47, %v532, %v530
    %v534 = vsel %vm49, %v533, 1.0
    %v535 = vpack.c.bf16 %v534, %v534
    %v537 = vsel %vm77, %v535, 0
    %539 = vmatprep.subr.bf16.mxu0 0
    %540 = vmatpush1.bf16.msra.mxu0 0
    %541 = vmatprep.subr.bf16.mxu0 0
    %542 = vmatpush1.bf16.msra.mxu0 0
    %543 = vmatprep.subr.bf16.mxu0 0
    %544 = vmatpush1.bf16.msra.mxu0 0
    %545 = vmatprep.subr.bf16.mxu0 0
    %546 = vmatpush1.bf16.msra.mxu0 0
    %547 = vmatprep.subr.bf16.mxu0 0
    %548 = vmatpush1.bf16.msra.mxu0 0
    %549 = vmatprep.subr.bf16.mxu0 %v86
    %550 = vmatpush1.bf16.msra.mxu0 %v83
    %551 = vmatprep.subr.bf16.mxu0 %v70
    %552 = vmatpush1.bf16.msra.mxu0 %v69
    %553 = vmatprep.subr.bf16.mxu0 %v68
    %554 = vmatpush1.bf16.msra.mxu0 %v67
    %555 = vmatprep.subr.bf16.mxu0 0
    %556 = vmatpush2.bf16.msra.mxu0 0
    %557 = vmatprep.subr.bf16.mxu0 0
    %558 = vmatpush2.bf16.msra.mxu0 0
    %559 = vmatprep.subr.bf16.mxu0 0
    %560 = vmatpush2.bf16.msra.mxu0 0
    %561 = vmatprep.subr.bf16.mxu0 0
    %562 = vmatpush2.bf16.msra.mxu0 0
    %563 = vmatprep.subr.bf16.mxu0 0
    %564 = vmatpush2.bf16.msra.mxu0 0
    %565 = vmatprep.subr.bf16.mxu0 0
    %566 = vmatpush2.bf16.msra.mxu0 0
    %567 = vmatprep.subr.bf16.mxu0 0
    %568 = vmatpush2.bf16.msra.mxu0 0
    %569 = vmatprep.subr.bf16.mxu0 0
    %570 = vmatpush2.bf16.msra.mxu0 0
    %571 = vmatprep.mubr.bf16.mxu0 0
    %572 = vmatmul.mubr.bf16.gmra.mxu0 %v537
    %v573 = vpop.f32.mrf.mxu0
    %v574 = vadd.f32 0.0, %v573
    %v575 = vpop.f32.mrf.mxu0
    %v576 = vadd.f32 0.0, %v575
    %v577 = vpop.f32.mrf.mxu0
    %v578 = vpop.f32.mrf.mxu0
    %579 = vdwg.mxu0
    %v580 = vtanh.pop %v574
    %v581 = vmul.f32 %v580, 0.5
    %v582 = vadd.f32 %v581, 0.5
    %v583 = vmul.f32 %v582, %v447
    %585 = vrot.lane.b32.xlu0 %v580, 64
    %v586 = vpop.permute.xlu0 %585
    %v588 = vmul.f32 %v582, %v586
    %590 = vrot.lane.b32.xlu0 %v588, 32
    %v591 = vpop.permute.xlu0 %590
    %v593 = vadd.f32 %v583, %v591
    %v594 = vtanh.pop %v593
    %596 = vrot.lane.b32.xlu0 %v594, 64
    %v597 = vpop.permute.xlu0 %596
    %v599 = vmul.f32 %v582, %v597
    %v600 = vpack.c.bf16 %v599, %v599
    %602 = vrot.lane.b32.xlu0 %v600, 32
    %v603 = vpop.permute.xlu0 %602
    %v605 = vsel %vm165, %v603, 0
    %607 = vmatprep.subr.bf16.mxu0 0
    %608 = vmatpush1.bf16.msra.mxu0 0
    %609 = vmatprep.subr.bf16.mxu0 0
    %610 = vmatpush1.bf16.msra.mxu0 0
    %611 = vmatprep.subr.bf16.mxu0 0
    %612 = vmatpush1.bf16.msra.mxu0 0
    %613 = vmatprep.subr.bf16.mxu0 0
    %614 = vmatpush1.bf16.msra.mxu0 0
    %615 = vmatprep.subr.bf16.mxu0 0
    %616 = vmatpush1.bf16.msra.mxu0 0
    %617 = vmatprep.subr.bf16.mxu0 0
    %618 = vmatpush1.bf16.msra.mxu0 0
    %619 = vmatprep.subr.bf16.mxu0 0
    %620 = vmatpush1.bf16.msra.mxu0 %v162
    %621 = vmatprep.subr.bf16.mxu0 0
    %622 = vmatpush1.bf16.msra.mxu0 %v161
    %623 = vmatprep.subr.bf16.mxu0 0
    %624 = vmatpush2.bf16.msra.mxu0 0
    %625 = vmatprep.subr.bf16.mxu0 0
    %626 = vmatpush2.bf16.msra.mxu0 0
    %627 = vmatprep.subr.bf16.mxu0 0
    %628 = vmatpush2.bf16.msra.mxu0 0
    %629 = vmatprep.subr.bf16.mxu0 0
    %630 = vmatpush2.bf16.msra.mxu0 0
    %631 = vmatprep.subr.bf16.mxu0 0
    %632 = vmatpush2.bf16.msra.mxu0 0
    %633 = vmatprep.subr.bf16.mxu0 0
    %634 = vmatpush2.bf16.msra.mxu0 0
    %635 = vmatprep.subr.bf16.mxu0 0
    %636 = vmatpush2.bf16.msra.mxu0 0
    %637 = vmatprep.subr.bf16.mxu0 0
    %638 = vmatpush2.bf16.msra.mxu0 0
    %639 = vmatprep.mubr.bf16.mxu0 0
    %640 = vmatmul.mubr.bf16.gmra.mxu0 %v605
    %v641 = vpop.f32.mrf.mxu0
    %v642 = vadd.f32 %v576, %v641
    %v643 = vpop.f32.mrf.mxu0
    %v644 = vpop.f32.mrf.mxu0
    %v645 = vpop.f32.mrf.mxu0
    %646 = vdwg.mxu0
    %v647 = vtanh.pop %v642
    %v648 = vmul.f32 %v647, 0.5
    %v649 = vadd.f32 %v648, 0.5
    %v650 = vmul.f32 %v649, %v514
    %652 = vrot.lane.b32.xlu0 %v647, 124
    %v653 = vpop.permute.xlu0 %652
    %v655 = vmul.f32 %v649, %v653
    %657 = vrot.lane.b32.xlu0 %v655, 2
    %v658 = vpop.permute.xlu0 %657
    %v660 = vadd.f32 %v650, %v658
    %v661 = vtanh.pop %v660
    %663 = vrot.lane.b32.xlu0 %v661, 4
    %v664 = vpop.permute.xlu0 %663
    %v666 = vmul.f32 %v649, %v664
    %668 = vrot.lane.b32.xlu0 %v599, 32
    %v669 = vpop.permute.xlu0 %668
    %672 = vrot.lane.b32.xlu0 %v666, 26
    %v673 = vpop.permute.xlu0 %672
    %675 = vrot.lane.b32.xlu0 %v42, 30
    %v676 = vpop.permute.xlu0 %675
    %v678 = vsel %vm165, %v669, %v673
    %v679 = vsel %vm47, %v678, %v676
    %v680 = vsel %vm49, %v679, 1.0
    %v681 = vpack.c.bf16 %v680, %v680
    %v683 = vsel %vm77, %v681, 0
    %685 = vmatprep.subr.bf16.mxu0 0
    %686 = vmatpush1.bf16.msra.mxu0 0
    %687 = vmatprep.subr.bf16.mxu0 0
    %688 = vmatpush1.bf16.msra.mxu0 0
    %689 = vmatprep.subr.bf16.mxu0 0
    %690 = vmatpush1.bf16.msra.mxu0 0
    %691 = vmatprep.subr.bf16.mxu0 0
    %692 = vmatpush1.bf16.msra.mxu0 0
    %693 = vmatprep.subr.bf16.mxu0 0
    %694 = vmatpush1.bf16.msra.mxu0 0
    %695 = vmatprep.subr.bf16.mxu0 %v86
    %696 = vmatpush1.bf16.msra.mxu0 %v83
    %697 = vmatprep.subr.bf16.mxu0 %v70
    %698 = vmatpush1.bf16.msra.mxu0 %v69
    %699 = vmatprep.subr.bf16.mxu0 %v68
    %700 = vmatpush1.bf16.msra.mxu0 %v67
    %701 = vmatprep.subr.bf16.mxu0 0
    %702 = vmatpush2.bf16.msra.mxu0 0
    %703 = vmatprep.subr.bf16.mxu0 0
    %704 = vmatpush2.bf16.msra.mxu0 0
    %705 = vmatprep.subr.bf16.mxu0 0
    %706 = vmatpush2.bf16.msra.mxu0 0
    %707 = vmatprep.subr.bf16.mxu0 0
    %708 = vmatpush2.bf16.msra.mxu0 0
    %709 = vmatprep.subr.bf16.mxu0 0
    %710 = vmatpush2.bf16.msra.mxu0 0
    %711 = vmatprep.subr.bf16.mxu0 0
    %712 = vmatpush2.bf16.msra.mxu0 0
    %713 = vmatprep.subr.bf16.mxu0 0
    %714 = vmatpush2.bf16.msra.mxu0 0
    %715 = vmatprep.subr.bf16.mxu0 0
    %716 = vmatpush2.bf16.msra.mxu0 0
    %717 = vmatprep.mubr.bf16.mxu0 0
    %718 = vmatmul.mubr.bf16.gmra.mxu0 %v683
    %v719 = vpop.f32.mrf.mxu0
    %v720 = vadd.f32 0.0, %v719
    %v721 = vpop.f32.mrf.mxu0
    %v722 = vadd.f32 0.0, %v721
    %v723 = vpop.f32.mrf.mxu0
    %v724 = vpop.f32.mrf.mxu0
    %725 = vdwg.mxu0
    %v726 = vtanh.pop %v720
    %v727 = vmul.f32 %v726, 0.5
    %v728 = vadd.f32 %v727, 0.5
    %v729 = vmul.f32 %v728, %v593
    %731 = vrot.lane.b32.xlu0 %v726, 64
    %v732 = vpop.permute.xlu0 %731
    %v734 = vmul.f32 %v728, %v732
    %736 = vrot.lane.b32.xlu0 %v734, 32
    %v737 = vpop.permute.xlu0 %736
    %v739 = vadd.f32 %v729, %v737
    %v740 = vtanh.pop %v739
    %742 = vrot.lane.b32.xlu0 %v740, 64
    %v743 = vpop.permute.xlu0 %742
    %v745 = vmul.f32 %v728, %v743
    %v746 = vpack.c.bf16 %v745, %v745
    %748 = vrot.lane.b32.xlu0 %v746, 32
    %v749 = vpop.permute.xlu0 %748
    %v751 = vsel %vm165, %v749, 0
    %753 = vmatprep.subr.bf16.mxu0 0
    %754 = vmatpush1.bf16.msra.mxu0 0
    %755 = vmatprep.subr.bf16.mxu0 0
    %756 = vmatpush1.bf16.msra.mxu0 0
    %757 = vmatprep.subr.bf16.mxu0 0
    %758 = vmatpush1.bf16.msra.mxu0 0
    %759 = vmatprep.subr.bf16.mxu0 0
    %760 = vmatpush1.bf16.msra.mxu0 0
    %761 = vmatprep.subr.bf16.mxu0 0
    %762 = vmatpush1.bf16.msra.mxu0 0
    %763 = vmatprep.subr.bf16.mxu0 0
    %764 = vmatpush1.bf16.msra.mxu0 0
    %765 = vmatprep.subr.bf16.mxu0 0
    %766 = vmatpush1.bf16.msra.mxu0 %v162
    %767 = vmatprep.subr.bf16.mxu0 0
    %768 = vmatpush1.bf16.msra.mxu0 %v161
    %769 = vmatprep.subr.bf16.mxu0 0
    %770 = vmatpush2.bf16.msra.mxu0 0
    %771 = vmatprep.subr.bf16.mxu0 0
    %772 = vmatpush2.bf16.msra.mxu0 0
    %773 = vmatprep.subr.bf16.mxu0 0
    %774 = vmatpush2.bf16.msra.mxu0 0
    %775 = vmatprep.subr.bf16.mxu0 0
    %776 = vmatpush2.bf16.msra.mxu0 0
    %777 = vmatprep.subr.bf16.mxu0 0
    %778 = vmatpush2.bf16.msra.mxu0 0
    %779 = vmatprep.subr.bf16.mxu0 0
    %780 = vmatpush2.bf16.msra.mxu0 0
    %781 = vmatprep.subr.bf16.mxu0 0
    %782 = vmatpush2.bf16.msra.mxu0 0
    %783 = vmatprep.subr.bf16.mxu0 0
    %784 = vmatpush2.bf16.msra.mxu0 0
    %785 = vmatprep.mubr.bf16.mxu0 0
    %786 = vmatmul.mubr.bf16.gmra.mxu0 %v751
    %v787 = vpop.f32.mrf.mxu0
    %v788 = vadd.f32 %v722, %v787
    %v789 = vpop.f32.mrf.mxu0
    %v790 = vpop.f32.mrf.mxu0
    %v791 = vpop.f32.mrf.mxu0
    %792 = vdwg.mxu0
    %v793 = vtanh.pop %v788
    %v794 = vmul.f32 %v793, 0.5
    %v795 = vadd.f32 %v794, 0.5
    %v796 = vmul.f32 %v795, %v660
    %798 = vrot.lane.b32.xlu0 %v793, 124
    %v799 = vpop.permute.xlu0 %798
    %v801 = vmul.f32 %v795, %v799
    %803 = vrot.lane.b32.xlu0 %v801, 2
    %v804 = vpop.permute.xlu0 %803
    %v806 = vadd.f32 %v796, %v804
    %v807 = vtanh.pop %v806
    %809 = vrot.lane.b32.xlu0 %v807, 4
    %v810 = vpop.permute.xlu0 %809
    %v812 = vmul.f32 %v795, %v810
    %814 = vrot.lane.b32.xlu0 %v745, 32
    %v815 = vpop.permute.xlu0 %814
    %818 = vrot.lane.b32.xlu0 %v812, 26
    %v819 = vpop.permute.xlu0 %818
    %821 = vrot.lane.b32.xlu0 %v42, 29
    %v822 = vpop.permute.xlu0 %821
    %v824 = vsel %vm165, %v815, %v819
    %v825 = vsel %vm47, %v824, %v822
    %v826 = vsel %vm49, %v825, 1.0
    %v827 = vpack.c.bf16 %v826, %v826
    %v829 = vsel %vm77, %v827, 0
    %831 = vmatprep.subr.bf16.mxu0 0
    %832 = vmatpush1.bf16.msra.mxu0 0
    %833 = vmatprep.subr.bf16.mxu0 0
    %834 = vmatpush1.bf16.msra.mxu0 0
    %835 = vmatprep.subr.bf16.mxu0 0
    %836 = vmatpush1.bf16.msra.mxu0 0
    %837 = vmatprep.subr.bf16.mxu0 0
    %838 = vmatpush1.bf16.msra.mxu0 0
    %839 = vmatprep.subr.bf16.mxu0 0
    %840 = vmatpush1.bf16.msra.mxu0 0
    %841 = vmatprep.subr.bf16.mxu0 %v86
    %842 = vmatpush1.bf16.msra.mxu0 %v83
    %843 = vmatprep.subr.bf16.mxu0 %v70
    %844 = vmatpush1.bf16.msra.mxu0 %v69
    %845 = vmatprep.subr.bf16.mxu0 %v68
    %846 = vmatpush1.bf16.msra.mxu0 %v67
    %847 = vmatprep.subr.bf16.mxu0 0
    %848 = vmatpush2.bf16.msra.mxu0 0
    %849 = vmatprep.subr.bf16.mxu0 0
    %850 = vmatpush2.bf16.msra.mxu0 0
    %851 = vmatprep.subr.bf16.mxu0 0
    %852 = vmatpush2.bf16.msra.mxu0 0
    %853 = vmatprep.subr.bf16.mxu0 0
    %854 = vmatpush2.bf16.msra.mxu0 0
    %855 = vmatprep.subr.bf16.mxu0 0
    %856 = vmatpush2.bf16.msra.mxu0 0
    %857 = vmatprep.subr.bf16.mxu0 0
    %858 = vmatpush2.bf16.msra.mxu0 0
    %859 = vmatprep.subr.bf16.mxu0 0
    %860 = vmatpush2.bf16.msra.mxu0 0
    %861 = vmatprep.subr.bf16.mxu0 0
    %862 = vmatpush2.bf16.msra.mxu0 0
    %863 = vmatprep.mubr.bf16.mxu0 0
    %864 = vmatmul.mubr.bf16.gmra.mxu0 %v829
    %v865 = vpop.f32.mrf.mxu0
    %v866 = vadd.f32 0.0, %v865
    %v867 = vpop.f32.mrf.mxu0
    %v868 = vadd.f32 0.0, %v867
    %v869 = vpop.f32.mrf.mxu0
    %v870 = vpop.f32.mrf.mxu0
    %871 = vdwg.mxu0
    %v872 = vtanh.pop %v866
    %v873 = vmul.f32 %v872, 0.5
    %v874 = vadd.f32 %v873, 0.5
    %v875 = vmul.f32 %v874, %v739
    %877 = vrot.lane.b32.xlu0 %v872, 64
    %v878 = vpop.permute.xlu0 %877
    %v880 = vmul.f32 %v874, %v878
    %882 = vrot.lane.b32.xlu0 %v880, 32
    %v883 = vpop.permute.xlu0 %882
    %v885 = vadd.f32 %v875, %v883
    %v886 = vtanh.pop %v885
    %888 = vrot.lane.b32.xlu0 %v886, 64
    %v889 = vpop.permute.xlu0 %888
    %v891 = vmul.f32 %v874, %v889
    %v892 = vpack.c.bf16 %v891, %v891
    %894 = vrot.lane.b32.xlu0 %v892, 32
    %v895 = vpop.permute.xlu0 %894
    %v897 = vsel %vm165, %v895, 0
    %899 = vmatprep.subr.bf16.mxu0 0
    %900 = vmatpush1.bf16.msra.mxu0 0
    %901 = vmatprep.subr.bf16.mxu0 0
    %902 = vmatpush1.bf16.msra.mxu0 0
    %903 = vmatprep.subr.bf16.mxu0 0
    %904 = vmatpush1.bf16.msra.mxu0 0
    %905 = vmatprep.subr.bf16.mxu0 0
    %906 = vmatpush1.bf16.msra.mxu0 0
    %907 = vmatprep.subr.bf16.mxu0 0
    %908 = vmatpush1.bf16.msra.mxu0 0
    %909 = vmatprep.subr.bf16.mxu0 0
    %910 = vmatpush1.bf16.msra.mxu0 0
    %911 = vmatprep.subr.bf16.mxu0 0
    %912 = vmatpush1.bf16.msra.mxu0 %v162
    %913 = vmatprep.subr.bf16.mxu0 0
    %914 = vmatpush1.bf16.msra.mxu0 %v161
    %915 = vmatprep.subr.bf16.mxu0 0
    %916 = vmatpush2.bf16.msra.mxu0 0
    %917 = vmatprep.subr.bf16.mxu0 0
    %918 = vmatpush2.bf16.msra.mxu0 0
    %919 = vmatprep.subr.bf16.mxu0 0
    %920 = vmatpush2.bf16.msra.mxu0 0
    %921 = vmatprep.subr.bf16.mxu0 0
    %922 = vmatpush2.bf16.msra.mxu0 0
    %923 = vmatprep.subr.bf16.mxu0 0
    %924 = vmatpush2.bf16.msra.mxu0 0
    %925 = vmatprep.subr.bf16.mxu0 0
    %926 = vmatpush2.bf16.msra.mxu0 0
    %927 = vmatprep.subr.bf16.mxu0 0
    %928 = vmatpush2.bf16.msra.mxu0 0
    %929 = vmatprep.subr.bf16.mxu0 0
    %930 = vmatpush2.bf16.msra.mxu0 0
    %931 = vmatprep.mubr.bf16.mxu0 0
    %932 = vmatmul.mubr.bf16.gmra.mxu0 %v897
    %v933 = vpop.f32.mrf.mxu0
    %v934 = vadd.f32 %v868, %v933
    %v935 = vpop.f32.mrf.mxu0
    %v936 = vpop.f32.mrf.mxu0
    %v937 = vpop.f32.mrf.mxu0
    %938 = vdwg.mxu0
    %v939 = vtanh.pop %v934
    %v940 = vmul.f32 %v939, 0.5
    %v941 = vadd.f32 %v940, 0.5
    %v942 = vmul.f32 %v941, %v806
    %944 = vrot.lane.b32.xlu0 %v939, 124
    %v945 = vpop.permute.xlu0 %944
    %v947 = vmul.f32 %v941, %v945
    %949 = vrot.lane.b32.xlu0 %v947, 2
    %v950 = vpop.permute.xlu0 %949
    %v952 = vadd.f32 %v942, %v950
    %v953 = vtanh.pop %v952
    %955 = vrot.lane.b32.xlu0 %v953, 4
    %v956 = vpop.permute.xlu0 %955
    %v958 = vmul.f32 %v941, %v956
    %960 = vrot.lane.b32.xlu0 %v891, 32
    %v961 = vpop.permute.xlu0 %960
    %964 = vrot.lane.b32.xlu0 %v958, 26
    %v965 = vpop.permute.xlu0 %964
    %967 = vrot.lane.b32.xlu0 %v42, 28
    %v968 = vpop.permute.xlu0 %967
    %v970 = vsel %vm165, %v961, %v965
    %v971 = vsel %vm47, %v970, %v968
    %v972 = vsel %vm49, %v971, 1.0
    %v973 = vpack.c.bf16 %v972, %v972
    %v975 = vsel %vm77, %v973, 0
    %977 = vmatprep.subr.bf16.mxu0 0
    %978 = vmatpush1.bf16.msra.mxu0 0
    %979 = vmatprep.subr.bf16.mxu0 0
    %980 = vmatpush1.bf16.msra.mxu0 0
    %981 = vmatprep.subr.bf16.mxu0 0
    %982 = vmatpush1.bf16.msra.mxu0 0
    %983 = vmatprep.subr.bf16.mxu0 0
    %984 = vmatpush1.bf16.msra.mxu0 0
    %985 = vmatprep.subr.bf16.mxu0 0
    %986 = vmatpush1.bf16.msra.mxu0 0
    %987 = vmatprep.subr.bf16.mxu0 %v86
    %988 = vmatpush1.bf16.msra.mxu0 %v83
    %989 = vmatprep.subr.bf16.mxu0 %v70
    %990 = vmatpush1.bf16.msra.mxu0 %v69
    %991 = vmatprep.subr.bf16.mxu0 %v68
    %992 = vmatpush1.bf16.msra.mxu0 %v67
    %993 = vmatprep.subr.bf16.mxu0 0
    %994 = vmatpush2.bf16.msra.mxu0 0
    %995 = vmatprep.subr.bf16.mxu0 0
    %996 = vmatpush2.bf16.msra.mxu0 0
    %997 = vmatprep.subr.bf16.mxu0 0
    %998 = vmatpush2.bf16.msra.mxu0 0
    %999 = vmatprep.subr.bf16.mxu0 0
    %1000 = vmatpush2.bf16.msra.mxu0 0
    %1001 = vmatprep.subr.bf16.mxu0 0
    %1002 = vmatpush2.bf16.msra.mxu0 0
    %1003 = vmatprep.subr.bf16.mxu0 0
    %1004 = vmatpush2.bf16.msra.mxu0 0
    %1005 = vmatprep.subr.bf16.mxu0 0
    %1006 = vmatpush2.bf16.msra.mxu0 0
    %1007 = vmatprep.subr.bf16.mxu0 0
    %1008 = vmatpush2.bf16.msra.mxu0 0
    %1009 = vmatprep.mubr.bf16.mxu0 0
    %1010 = vmatmul.mubr.bf16.gmra.mxu0 %v975
    %v1011 = vpop.f32.mrf.mxu0
    %v1012 = vadd.f32 0.0, %v1011
    %v1013 = vpop.f32.mrf.mxu0
    %v1014 = vadd.f32 0.0, %v1013
    %v1015 = vpop.f32.mrf.mxu0
    %v1016 = vpop.f32.mrf.mxu0
    %1017 = vdwg.mxu0
    %v1018 = vtanh.pop %v1012
    %v1019 = vmul.f32 %v1018, 0.5
    %v1020 = vadd.f32 %v1019, 0.5
    %v1021 = vmul.f32 %v1020, %v885
    %1023 = vrot.lane.b32.xlu0 %v1018, 64
    %v1024 = vpop.permute.xlu0 %1023
    %v1026 = vmul.f32 %v1020, %v1024
    %1028 = vrot.lane.b32.xlu0 %v1026, 32
    %v1029 = vpop.permute.xlu0 %1028
    %v1031 = vadd.f32 %v1021, %v1029
    %v1032 = vtanh.pop %v1031
    %1034 = vrot.lane.b32.xlu0 %v1032, 64
    %v1035 = vpop.permute.xlu0 %1034
    %v1037 = vmul.f32 %v1020, %v1035
    %v1038 = vpack.c.bf16 %v1037, %v1037
    %1040 = vrot.lane.b32.xlu0 %v1038, 32
    %v1041 = vpop.permute.xlu0 %1040
    %v1043 = vsel %vm165, %v1041, 0
    %1045 = vmatprep.subr.bf16.mxu0 0
    %1046 = vmatpush1.bf16.msra.mxu0 0
    %1047 = vmatprep.subr.bf16.mxu0 0
    %1048 = vmatpush1.bf16.msra.mxu0 0
    %1049 = vmatprep.subr.bf16.mxu0 0
    %1050 = vmatpush1.bf16.msra.mxu0 0
    %1051 = vmatprep.subr.bf16.mxu0 0
    %1052 = vmatpush1.bf16.msra.mxu0 0
    %1053 = vmatprep.subr.bf16.mxu0 0
    %1054 = vmatpush1.bf16.msra.mxu0 0
    %1055 = vmatprep.subr.bf16.mxu0 0
    %1056 = vmatpush1.bf16.msra.mxu0 0
    %1057 = vmatprep.subr.bf16.mxu0 0
    %1058 = vmatpush1.bf16.msra.mxu0 %v162
    %1059 = vmatprep.subr.bf16.mxu0 0
    %1060 = vmatpush1.bf16.msra.mxu0 %v161
    %1061 = vmatprep.subr.bf16.mxu0 0
    %1062 = vmatpush2.bf16.msra.mxu0 0
    %1063 = vmatprep.subr.bf16.mxu0 0
    %1064 = vmatpush2.bf16.msra.mxu0 0
    %1065 = vmatprep.subr.bf16.mxu0 0
    %1066 = vmatpush2.bf16.msra.mxu0 0
    %1067 = vmatprep.subr.bf16.mxu0 0
    %1068 = vmatpush2.bf16.msra.mxu0 0
    %1069 = vmatprep.subr.bf16.mxu0 0
    %1070 = vmatpush2.bf16.msra.mxu0 0
    %1071 = vmatprep.subr.bf16.mxu0 0
    %1072 = vmatpush2.bf16.msra.mxu0 0
    %1073 = vmatprep.subr.bf16.mxu0 0
    %1074 = vmatpush2.bf16.msra.mxu0 0
    %1075 = vmatprep.subr.bf16.mxu0 0
    %1076 = vmatpush2.bf16.msra.mxu0 0
    %1077 = vmatprep.mubr.bf16.mxu0 0
    %1078 = vmatmul.mubr.bf16.gmra.mxu0 %v1043
    %v1079 = vpop.f32.mrf.mxu0
    %v1080 = vadd.f32 %v1014, %v1079
    %v1081 = vpop.f32.mrf.mxu0
    %v1082 = vpop.f32.mrf.mxu0
    %v1083 = vpop.f32.mrf.mxu0
    %1084 = vdwg.mxu0
    %v1085 = vtanh.pop %v1080
    %v1086 = vmul.f32 %v1085, 0.5
    %v1087 = vadd.f32 %v1086, 0.5
    %v1088 = vmul.f32 %v1087, %v952
    %1090 = vrot.lane.b32.xlu0 %v1085, 124
    %v1091 = vpop.permute.xlu0 %1090
    %v1093 = vmul.f32 %v1087, %v1091
    %1095 = vrot.lane.b32.xlu0 %v1093, 2
    %v1096 = vpop.permute.xlu0 %1095
    %v1098 = vadd.f32 %v1088, %v1096
    %v1099 = vtanh.pop %v1098
    %1101 = vrot.lane.b32.xlu0 %v1099, 4
    %v1102 = vpop.permute.xlu0 %1101
    %v1104 = vmul.f32 %v1087, %v1102
    %1106 = vrot.lane.b32.xlu0 %v1037, 32
    %v1107 = vpop.permute.xlu0 %1106
    %1110 = vrot.lane.b32.xlu0 %v1104, 26
    %v1111 = vpop.permute.xlu0 %1110
    %1113 = vrot.lane.b32.xlu0 %v42, 27
    %v1114 = vpop.permute.xlu0 %1113
    %v1116 = vsel %vm165, %v1107, %v1111
    %v1117 = vsel %vm47, %v1116, %v1114
    %v1118 = vsel %vm49, %v1117, 1.0
    %v1119 = vpack.c.bf16 %v1118, %v1118
    %v1121 = vsel %vm77, %v1119, 0
    %1123 = vmatprep.subr.bf16.mxu0 0
    %1124 = vmatpush1.bf16.msra.mxu0 0
    %1125 = vmatprep.subr.bf16.mxu0 0
    %1126 = vmatpush1.bf16.msra.mxu0 0
    %1127 = vmatprep.subr.bf16.mxu0 0
    %1128 = vmatpush1.bf16.msra.mxu0 0
    %1129 = vmatprep.subr.bf16.mxu0 0
    %1130 = vmatpush1.bf16.msra.mxu0 0
    %1131 = vmatprep.subr.bf16.mxu0 0
    %1132 = vmatpush1.bf16.msra.mxu0 0
    %1133 = vmatprep.subr.bf16.mxu0 %v86
    %1134 = vmatpush1.bf16.msra.mxu0 %v83
    %1135 = vmatprep.subr.bf16.mxu0 %v70
    %1136 = vmatpush1.bf16.msra.mxu0 %v69
    %1137 = vmatprep.subr.bf16.mxu0 %v68
    %1138 = vmatpush1.bf16.msra.mxu0 %v67
    %1139 = vmatprep.subr.bf16.mxu0 0
    %1140 = vmatpush2.bf16.msra.mxu0 0
    %1141 = vmatprep.subr.bf16.mxu0 0
    %1142 = vmatpush2.bf16.msra.mxu0 0
    %1143 = vmatprep.subr.bf16.mxu0 0
    %1144 = vmatpush2.bf16.msra.mxu0 0
    %1145 = vmatprep.subr.bf16.mxu0 0
    %1146 = vmatpush2.bf16.msra.mxu0 0
    %1147 = vmatprep.subr.bf16.mxu0 0
    %1148 = vmatpush2.bf16.msra.mxu0 0
    %1149 = vmatprep.subr.bf16.mxu0 0
    %1150 = vmatpush2.bf16.msra.mxu0 0
    %1151 = vmatprep.subr.bf16.mxu0 0
    %1152 = vmatpush2.bf16.msra.mxu0 0
    %1153 = vmatprep.subr.bf16.mxu0 0
    %1154 = vmatpush2.bf16.msra.mxu0 0
    %1155 = vmatprep.mubr.bf16.mxu0 0
    %1156 = vmatmul.mubr.bf16.gmra.mxu0 %v1121
    %v1157 = vpop.f32.mrf.mxu0
    %v1158 = vadd.f32 0.0, %v1157
    %v1159 = vpop.f32.mrf.mxu0
    %v1160 = vadd.f32 0.0, %v1159
    %v1161 = vpop.f32.mrf.mxu0
    %v1162 = vpop.f32.mrf.mxu0
    %1163 = vdwg.mxu0
    %v1164 = vtanh.pop %v1158
    %v1165 = vmul.f32 %v1164, 0.5
    %v1166 = vadd.f32 %v1165, 0.5
    %v1167 = vmul.f32 %v1166, %v1031
    %1169 = vrot.lane.b32.xlu0 %v1164, 64
    %v1170 = vpop.permute.xlu0 %1169
    %v1172 = vmul.f32 %v1166, %v1170
    %1174 = vrot.lane.b32.xlu0 %v1172, 32
    %v1175 = vpop.permute.xlu0 %1174
    %v1177 = vadd.f32 %v1167, %v1175
    %v1178 = vtanh.pop %v1177
    %1180 = vrot.lane.b32.xlu0 %v1178, 64
    %v1181 = vpop.permute.xlu0 %1180
    %v1183 = vmul.f32 %v1166, %v1181
    %v1184 = vpack.c.bf16 %v1183, %v1183
    %1186 = vrot.lane.b32.xlu0 %v1184, 32
    %v1187 = vpop.permute.xlu0 %1186
    %v1189 = vsel %vm165, %v1187, 0
    %1191 = vmatprep.subr.bf16.mxu0 0
    %1192 = vmatpush1.bf16.msra.mxu0 0
    %1193 = vmatprep.subr.bf16.mxu0 0
    %1194 = vmatpush1.bf16.msra.mxu0 0
    %1195 = vmatprep.subr.bf16.mxu0 0
    %1196 = vmatpush1.bf16.msra.mxu0 0
    %1197 = vmatprep.subr.bf16.mxu0 0
    %1198 = vmatpush1.bf16.msra.mxu0 0
    %1199 = vmatprep.subr.bf16.mxu0 0
    %1200 = vmatpush1.bf16.msra.mxu0 0
    %1201 = vmatprep.subr.bf16.mxu0 0
    %1202 = vmatpush1.bf16.msra.mxu0 0
    %1203 = vmatprep.subr.bf16.mxu0 0
    %1204 = vmatpush1.bf16.msra.mxu0 %v162
    %1205 = vmatprep.subr.bf16.mxu0 0
    %1206 = vmatpush1.bf16.msra.mxu0 %v161
    %1207 = vmatprep.subr.bf16.mxu0 0
    %1208 = vmatpush2.bf16.msra.mxu0 0
    %1209 = vmatprep.subr.bf16.mxu0 0
    %1210 = vmatpush2.bf16.msra.mxu0 0
    %1211 = vmatprep.subr.bf16.mxu0 0
    %1212 = vmatpush2.bf16.msra.mxu0 0
    %1213 = vmatprep.subr.bf16.mxu0 0
    %1214 = vmatpush2.bf16.msra.mxu0 0
    %1215 = vmatprep.subr.bf16.mxu0 0
    %1216 = vmatpush2.bf16.msra.mxu0 0
    %1217 = vmatprep.subr.bf16.mxu0 0
    %1218 = vmatpush2.bf16.msra.mxu0 0
    %1219 = vmatprep.subr.bf16.mxu0 0
    %1220 = vmatpush2.bf16.msra.mxu0 0
    %1221 = vmatprep.subr.bf16.mxu0 0
    %1222 = vmatpush2.bf16.msra.mxu0 0
    %1223 = vmatprep.mubr.bf16.mxu0 0
    %1224 = vmatmul.mubr.bf16.gmra.mxu0 %v1189
    %v1225 = vpop.f32.mrf.mxu0
    %v1226 = vadd.f32 %v1160, %v1225
    %v1227 = vpop.f32.mrf.mxu0
    %v1228 = vpop.f32.mrf.mxu0
    %v1229 = vpop.f32.mrf.mxu0
    %1230 = vdwg.mxu0
    %v1231 = vtanh.pop %v1226
    %v1232 = vmul.f32 %v1231, 0.5
    %v1233 = vadd.f32 %v1232, 0.5
    %v1234 = vmul.f32 %v1233, %v1098
    %1236 = vrot.lane.b32.xlu0 %v1231, 124
    %v1237 = vpop.permute.xlu0 %1236
    %v1239 = vmul.f32 %v1233, %v1237
    %1241 = vrot.lane.b32.xlu0 %v1239, 2
    %v1242 = vpop.permute.xlu0 %1241
    %v1244 = vadd.f32 %v1234, %v1242
    %v1245 = vtanh.pop %v1244
    %1247 = vrot.lane.b32.xlu0 %v1245, 4
    %v1248 = vpop.permute.xlu0 %1247
    %v1250 = vmul.f32 %v1233, %v1248
    %1251 = vrot.lane.b32.xlu0 %v228, 122
    %v1252 = vpop.permute.xlu0 %1251
    %1254 = vrot.lane.b32.xlu0 %v374, 123
    %v1255 = vpop.permute.xlu0 %1254
    %1257 = vrot.lane.b32.xlu0 %v520, 124
    %v1258 = vpop.permute.xlu0 %1257
    %1260 = vrot.lane.b32.xlu0 %v666, 125
    %v1261 = vpop.permute.xlu0 %1260
    %1263 = vrot.lane.b32.xlu0 %v812, 126
    %v1264 = vpop.permute.xlu0 %1263
    %1266 = vrot.lane.b32.xlu0 %v958, 127
    %v1267 = vpop.permute.xlu0 %1266
    %1270 = vrot.lane.b32.xlu0 %v1250, 1
    %v1271 = vpop.permute.xlu0 %1270
    %vm1273 = vcmask 7168
    %v1274 = vsel %vm1273, %v1252, %v1255
    %vm1275 = vcmask 15360
    %v1276 = vsel %vm1275, %v1274, %v1258
    %vm1277 = vcmask 23552
    %v1278 = vsel %vm1277, %v1276, %v1261
    %vm1279 = vcmask 31744
    %v1280 = vsel %vm1279, %v1278, %v1264
    %vm1281 = vcmask 39936
    %v1282 = vsel %vm1281, %v1280, %v1267
    %vm1283 = vcmask 48128
    %v1284 = vsel %vm1283, %v1282, %v1104
    %vm1285 = vcmask 56320
    %v1286 = vsel %vm1285, %v1284, %v1271
    %vm1287 = vcmask 58368
    %1288 = vst.msk [vmem:[#allocation5] sm:$0x3] %vm1287, %v1286
    %1289 = vrot.lane.b32.xlu0 %v228, 121
    %v1290 = vpop.permute.xlu0 %1289
    %1292 = vrot.lane.b32.xlu0 %v374, 122
    %v1293 = vpop.permute.xlu0 %1292
    %1295 = vrot.lane.b32.xlu0 %v520, 123
    %v1296 = vpop.permute.xlu0 %1295
    %1298 = vrot.lane.b32.xlu0 %v666, 124
    %v1299 = vpop.permute.xlu0 %1298
    %1301 = vrot.lane.b32.xlu0 %v812, 125
    %v1302 = vpop.permute.xlu0 %1301
    %1304 = vrot.lane.b32.xlu0 %v958, 126
    %v1305 = vpop.permute.xlu0 %1304
    %1307 = vrot.lane.b32.xlu0 %v1104, 127
    %v1308 = vpop.permute.xlu0 %1307
    %v1310 = vsel %vm1273, %v1290, %v1293
    %v1311 = vsel %vm1275, %v1310, %v1296
    %v1312 = vsel %vm1277, %v1311, %v1299
    %v1313 = vsel %vm1279, %v1312, %v1302
    %v1314 = vsel %vm1281, %v1313, %v1305
    %v1315 = vsel %vm1283, %v1314, %v1308
    %v1316 = vsel %vm1285, %v1315, %v1250
    %1317 = vst.msk [vmem:[#allocation6] sm:$0x3] %vm1287, %v1316
    // Predicated region
    $region18: #{lstm_ae_pred_forward.1} parent=1 // pred_check
      _
    $region19: #{lstm_ae_pred_forward.1} parent=1 // pred_check_branch
      %1319 = sbr.rel (0) target = $region21
    $region20: #{lstm_ae_pred_forward.1} parent=1 // pred_region
      %s1321 = ssub.s32 32, 32
      %1322 = vsyncadd [#allocation4], %s1321
      %s1324 = sshll.u32 [#allocation5], 4
      %s1325 = int_to_ptr.vmem [resolvable:$true] %s1324
      %1327 = dma.vmem_to_hbm [thread:$0]  %s1325, 32, %s3, [#allocation4]
    $region21: #{lstm_ae_pred_forward.1} parent=1 // pred_fallthru
      _
    // Predicated region
    $region22: #{lstm_ae_pred_forward.1} parent=1 // pred_check
      _
    $region23: #{lstm_ae_pred_forward.1} parent=1 // pred_check_branch
      %1329 = sbr.rel (0) target = $region25
    $region24: #{lstm_ae_pred_forward.1} parent=1 // pred_region
      %s1331 = ssub.s32 32, 32
      %1332 = vsyncadd [#allocation7], %s1331
      %s1334 = sshll.u32 [#allocation6], 4
      %s1335 = int_to_ptr.vmem [resolvable:$true] %s1334
      %1337 = dma.vmem_to_hbm [thread:$0]  %s1335, 32, %s4, [#allocation7]
    $region25: #{lstm_ae_pred_forward.1} parent=1 // pred_fallthru
      _
    // Predicated region
    $region26: #{lstm_ae_pred_forward.1} parent=1 // pred_check
      _
    $region27: #{lstm_ae_pred_forward.1} parent=1 // pred_check_branch
      %1339 = sbr.rel (0) target = $region29
    $region28: #{lstm_ae_pred_forward.1} parent=1 // pred_region
      %1340 = dma.done [#allocation4], 32
    $region29: #{lstm_ae_pred_forward.1} parent=1 // pred_fallthru
      _
    // Predicated region
    $region30: #{lstm_ae_pred_forward.1} parent=1 // pred_check
      _
    $region31: #{lstm_ae_pred_forward.1} parent=1 // pred_check_branch
      %1342 = sbr.rel (0) target = $region33
    $region32: #{lstm_ae_pred_forward.1} parent=1 // pred_region
      %1343 = dma.done [#allocation7], 32
    $region33: #{lstm_ae_pred_forward.1} parent=1 // pred_fallthru
      _
    %1344 = vsyncpa [#allocation3], 1
    %1345 = vsyncpa [#allocation4], 1
    %1346 = vsyncpa [#allocation7], 1

</llo_original>
